<compile_context>
chip_gen: v7x
topology: tpu7x:2x2x1
jax: 0.10.0
libtpu: 0.0.40
codegen_flags: <defaults>
</compile_context>

<pallas_src>
import functools

import jax
import jax.numpy as jnp
from jax.experimental import pallas as pl
from jax.experimental.pallas import tpu as pltpu


def _round_up(x, m):
    return ((x + m - 1) // m) * m


def _apply_gates(y, a_ref, s_ref, y_ref):
    # y: f32 pre-activation (4Hp, TL); sigmoid rows were pre-scaled by 0.5 in
    # the weights/bias, so a single tanh (EUP) + FMA against resident (4Hp, 1)
    # vectors gives:
    #   Z rows   (a=1.0, s=0.0):  tanh(v)
    #   F/O/I    (a=0.5, s=0.5):  0.5*tanh(v/2) + 0.5 == sigmoid(v)
    t = jnp.tanh(y)
    y_ref[...] = (a_ref[...] * t + s_ref[...]).astype(y_ref.dtype)


def _convlayer_kernel_fused(x_ref, w1_ref, w0_ref, b_ref, a_ref, s_ref,
                            y_ref, carry_ref):
    """Single x stream; causal shift built in-kernel from a 1-column carry."""
    @pl.when(pl.program_id(1) == 0)
    def _():  # first time-tile of a batch -> x_{-1} = 0
        carry_ref[...] = jnp.zeros_like(carry_ref)

    x = x_ref[...]                                     # (C, TL)
    tl = x.shape[-1]
    x_prev = jnp.concatenate([carry_ref[...], x[:, :tl - 1]], axis=1)
    carry_ref[...] = x[:, tl - 1:]                     # carry into next tile

    y = (jnp.dot(w1_ref[...], x, preferred_element_type=jnp.float32)
         + jnp.dot(w0_ref[...], x_prev, preferred_element_type=jnp.float32)
         + b_ref[...])
    _apply_gates(y, a_ref, s_ref, y_ref)


def _convlayer_kernel_twostream(x_ref, xp_ref, w1_ref, w0_ref, b_ref, a_ref,
                                s_ref, y_ref):
    """Fallback: shifted tap streamed as a second (wrapper-built) input."""
    y = (jnp.dot(w1_ref[...], x_ref[...], preferred_element_type=jnp.float32)
         + jnp.dot(w0_ref[...], xp_ref[...], preferred_element_type=jnp.float32)
         + b_ref[...])
    _apply_gates(y, a_ref, s_ref, y_ref)


def conv_layer_forward(x, weight, bias, output_size, *, time_tile=512,
                       shift_in_kernel=True, single_buffer_weights=True):
    """x: (N, C_in, L); weight: (4H, C_in, 2); bias: (4H,).

    Returns (Z, F, O, I), each (N, H, L) — same as the PyTorch module.
    Works for f32 or bf16 inputs (accumulation/activations stay f32).
    """
    n, c_in, length = x.shape
    h = output_size
    c4 = 4 * h
    assert weight.shape == (c4, c_in, 2)
    assert bias.shape == (c4,)
    c4p = _round_up(c4, 8)          # sublane-aligned gate axis
    dt = x.dtype                    # streamed dtype (f32 or bf16)

    # ---- time tiling: lane-dense (multiple-of-128) tiles when L allows -----
    # (sweep time_tile to 1024 on v6e; 256-384 on v7x for very large C*4H)
    if length >= 128:
        tl = min(_round_up(time_tile, 128), _round_up(length, 128))
    else:
        tl = length                 # tiny L: use the full (unpadded) axis
    l_pad = _round_up(length, tl)
    x_in = x if l_pad == length else jnp.pad(
        x, ((0, 0), (0, 0), (0, l_pad - length)))

    # ---- small resident operands (one-time work on the weights only) -------
    gate = jnp.concatenate([jnp.ones((h,), jnp.float32),
                            jnp.full((3 * h,), 0.5, jnp.float32)])
    w1 = weight[:, :, 1].astype(jnp.float32) * gate[:, None]   # x_t tap
    w0 = weight[:, :, 0].astype(jnp.float32) * gate[:, None]   # x_{t-1} tap
    bb = bias.astype(jnp.float32) * gate
    if c4p != c4:
        w1 = jnp.pad(w1, ((0, c4p - c4), (0, 0)))
        w0 = jnp.pad(w0, ((0, c4p - c4), (0, 0)))
        bb = jnp.pad(bb, ((0, c4p - c4),))
    w1 = w1.astype(dt)
    w0 = w0.astype(dt)
    b2 = bb.reshape(c4p, 1)                                     # f32 resident
    row = jnp.arange(c4p)
    act_scale = jnp.where(row < h, 1.0, 0.5).astype(jnp.float32).reshape(c4p, 1)
    act_shift = jnp.where(row < h, 0.0, 0.5).astype(jnp.float32).reshape(c4p, 1)

    # ---- VMEM budget (tiles double-buffered, weights single/double) --------
    xbytes = jnp.dtype(dt).itemsize
    wbuf = 1 if single_buffer_weights else 2
    vmem_needed = (4 * c_in * tl * xbytes            # x (+ shifted x) streams
                   + 2 * c4p * tl * xbytes           # output double buffer
                   + wbuf * (2 * c4p * c_in * xbytes + 3 * c4p * 4)
                   + c_in * xbytes)                  # carry
    vmem_limit = int(min(max(2 * vmem_needed, 32 << 20), 64 << 20))

    resident_kwargs = (
        {"pipeline_mode": pl.Buffered(1)} if single_buffer_weights else {})
    stream_spec = pl.BlockSpec((None, c_in, tl), lambda nb, lb: (nb, 0, lb))
    resident_specs = [
        pl.BlockSpec((c4p, c_in), lambda nb, lb: (0, 0), **resident_kwargs),
        pl.BlockSpec((c4p, c_in), lambda nb, lb: (0, 0), **resident_kwargs),
        pl.BlockSpec((c4p, 1), lambda nb, lb: (0, 0), **resident_kwargs),
        pl.BlockSpec((c4p, 1), lambda nb, lb: (0, 0), **resident_kwargs),
        pl.BlockSpec((c4p, 1), lambda nb, lb: (0, 0), **resident_kwargs),
    ]
    out_spec = pl.BlockSpec((None, c4p, tl), lambda nb, lb: (nb, 0, lb))
    out_shape = jax.ShapeDtypeStruct((n, c4p, l_pad), dt)
    grid = (n, l_pad // tl)

    if shift_in_kernel:
        y = pl.pallas_call(
            _convlayer_kernel_fused,
            out_shape=out_shape,
            grid=grid,
            in_specs=[stream_spec] + resident_specs,
            out_specs=out_spec,
            scratch_shapes=[pltpu.VMEM((c_in, 1), dt)],
            compiler_params=pltpu.CompilerParams(
                dimension_semantics=("parallel", "arbitrary"),
                vmem_limit_bytes=vmem_limit),
        )(x_in, w1, w0, b2, act_scale, act_shift)
    else:
        x_prev = jnp.concatenate(
            [jnp.zeros((n, c_in, 1), dt), x_in[:, :, :l_pad - 1]], axis=2)
        y = pl.pallas_call(
            _convlayer_kernel_twostream,
            out_shape=out_shape,
            grid=grid,
            in_specs=[stream_spec, stream_spec] + resident_specs,
            out_specs=out_spec,
            compiler_params=pltpu.CompilerParams(
                dimension_semantics=("parallel", "parallel"),
                vmem_limit_bytes=vmem_limit),
        )(x_in, x_prev, w1, w0, b2, act_scale, act_shift)

    # Output is already channel-major (N, 4H, L): no transpose, only slicing.
    y = y[:, :c4, :length]
    return (y[:, 0 * h:1 * h, :], y[:, 1 * h:2 * h, :],
            y[:, 2 * h:3 * h, :], y[:, 3 * h:4 * h, :])


def _reference(x, weight, bias, output_size):
    """Plain-JAX reference of the PyTorch forward, for correctness checking."""
    n, c_in, length = x.shape
    x_prev = jnp.concatenate(
        [jnp.zeros((n, c_in, 1), x.dtype), x[:, :, :-1]], axis=2)
    y = (jnp.einsum('oc,nct->not', weight[:, :, 0], x_prev)
         + jnp.einsum('oc,nct->not', weight[:, :, 1], x)
         + bias[None, :, None])
    z, f, o, i = jnp.split(y, 4, axis=1)
    return (jnp.tanh(z), jax.nn.sigmoid(f), jax.nn.sigmoid(o), jax.nn.sigmoid(i))


if __name__ == "__main__":
    key = jax.random.PRNGKey(0)
    k_x, k_w, k_b = jax.random.split(key, 3)

    batch, input_size, output_size, seq = 2, 4, 8, 16
    x = jax.random.normal(k_x, (batch, input_size, seq), dtype=jnp.float32)
    weight = jax.random.normal(
        k_w, (4 * output_size, input_size, 2), dtype=jnp.float32) * 0.1
    bias = jax.random.normal(k_b, (4 * output_size,), dtype=jnp.float32) * 0.1

    refs = _reference(x, weight, bias, output_size)

    def _run(xa, wa, ba, cfg):
        fwd = jax.jit(functools.partial(
            conv_layer_forward, output_size=output_size,
            shift_in_kernel=cfg[0], single_buffer_weights=cfg[1]))
        return jax.block_until_ready(fwd(xa, wa, ba))

    def _check(outs, atol, rtol):
        for got, ref in zip(outs, refs):
            assert got.shape == ref.shape
            assert jnp.allclose(got.astype(jnp.float32), ref, atol=atol, rtol=rtol)

    def _first_working(xa, wa, ba, configs, atol, rtol):
        err = None
        for cfg in configs:
            try:
                outs = _run(xa, wa, ba, cfg)
                _check(outs, atol, rtol)
                return cfg
            except Exception as e:  # graceful fallback if a feature is unsupported
                err = e
        raise err

    # f32 path: prefer (in-kernel causal shift, single-buffered resident
    # weights); fall back to the two-stream / default-buffered variants.
    chosen = _first_working(
        x, weight, bias,
        configs=[(True, True), (True, False), (False, False)],
        atol=1e-5, rtol=1e-5)

    # bf16 streaming path (halves HBM bytes for x and the output slab);
    # relaxed tolerance since inputs/outputs are rounded to bf16.
    _first_working(
        x.astype(jnp.bfloat16), weight.astype(jnp.bfloat16),
        bias.astype(jnp.bfloat16),
        configs=[chosen, (False, False)],
        atol=3e-2, rtol=3e-2)

    print("KERNEL_OK")
</pallas_src>

<mosaic_0001>
module attributes {stable_mosaic.version = 11 : i64} {
  func.func @_convlayer_kernel_fused(%arg0: i32, %arg1: i32, %arg2: memref<1x4x16xf32, #tpu.memory_space<vmem>>, %arg3: memref<32x4xf32, #tpu.memory_space<vmem>>, %arg4: memref<32x4xf32, #tpu.memory_space<vmem>>, %arg5: memref<32x1xf32, #tpu.memory_space<vmem>>, %arg6: memref<32x1xf32, #tpu.memory_space<vmem>>, %arg7: memref<32x1xf32, #tpu.memory_space<vmem>>, %arg8: memref<1x32x16xf32, #tpu.memory_space<vmem>>, %arg9: memref<4x1xf32, #tpu.memory_space<vmem>>) attributes {dimension_semantics = [#tpu.dimension_semantics<parallel>, #tpu.dimension_semantics<arbitrary>], iteration_bounds = array<i64: 2, 1>, scalar_prefetch = 0 : i64, scratch_operands = 1 : i64, tpu.core_type = #tpu.core_type<tc>, window_params = [{transform_indices = @transform_0, window_bounds = array<i64: 1, 4, 16>}, {pipeline_mode = #tpu.pipeline_mode<synchronous>, transform_indices = @transform_1, window_bounds = array<i64: 32, 4>}, {pipeline_mode = #tpu.pipeline_mode<synchronous>, transform_indices = @transform_2, window_bounds = array<i64: 32, 4>}, {pipeline_mode = #tpu.pipeline_mode<synchronous>, transform_indices = @transform_3, window_bounds = array<i64: 32, 1>}, {pipeline_mode = #tpu.pipeline_mode<synchronous>, transform_indices = @transform_4, window_bounds = array<i64: 32, 1>}, {pipeline_mode = #tpu.pipeline_mode<synchronous>, transform_indices = @transform_5, window_bounds = array<i64: 32, 1>}, {transform_indices = @transform_6, window_bounds = array<i64: 1, 32, 16>}]} {
    %c0_i32 = arith.constant 0 : i32
    %0 = arith.cmpi eq, %arg1, %c0_i32 : i32
    %1 = arith.extui %0 : i1 to i32
    %c0_i32_0 = arith.constant 0 : i32
    %2 = arith.cmpi ne, %1, %c0_i32_0 : i32
    scf.if %2 {
      %cst_21 = arith.constant 0.000000e+00 : f32
      %28 = vector.broadcast %cst_21 : f32 to vector<4x1xf32>
      %c0_22 = arith.constant 0 : index
      %c0_23 = arith.constant 0 : index
      %29 = vector.load %arg9[%c0_22, %c0_23] : memref<4x1xf32, #tpu.memory_space<vmem>>, vector<4x1xf32>
      tpu.vector_store %arg9[%c0_22, %c0_23], %28 {strides = array<i32>} : memref<4x1xf32, #tpu.memory_space<vmem>>, vector<4x1xf32>,
    } else {
    }
    %c0 = arith.constant 0 : index
    %c0_1 = arith.constant 0 : index
    %c0_2 = arith.constant 0 : index
    %3 = vector.load %arg2[%c0, %c0_1, %c0_2] : memref<1x4x16xf32, #tpu.memory_space<vmem>>, vector<1x4x16xf32>
    %4 = vector.shape_cast %3 : vector<1x4x16xf32> to vector<4x16xf32>
    %c0_3 = arith.constant 0 : index
    %c0_4 = arith.constant 0 : index
    %5 = vector.load %arg9[%c0_3, %c0_4] : memref<4x1xf32, #tpu.memory_space<vmem>>, vector<4x1xf32>
    %6 = vector.extract_strided_slice %4 {offsets = [0, 0], sizes = [4, 15], strides = [1, 1]} : vector<4x16xf32> to vector<4x15xf32>
    %7 = tpu.concatenate %5, %6 in 1 : vector<4x1xf32>, vector<4x15xf32> -> vector<4x16xf32>
    %8 = vector.extract_strided_slice %4 {offsets = [0, 15], sizes = [4, 1], strides = [1, 1]} : vector<4x16xf32> to vector<4x1xf32>
    %c0_5 = arith.constant 0 : index
    %c0_6 = arith.constant 0 : index
    %9 = vector.load %arg9[%c0_5, %c0_6] : memref<4x1xf32, #tpu.memory_space<vmem>>, vector<4x1xf32>
    tpu.vector_store %arg9[%c0_5, %c0_6], %8 {strides = array<i32>} : memref<4x1xf32, #tpu.memory_space<vmem>>, vector<4x1xf32>,
    %c0_7 = arith.constant 0 : index
    %c0_8 = arith.constant 0 : index
    %10 = vector.load %arg3[%c0_7, %c0_8] : memref<32x4xf32, #tpu.memory_space<vmem>>, vector<32x4xf32>
    %cst = arith.constant dense<0.000000e+00> : vector<32x16xf32>
    %11 = tpu.matmul %10, %4, %cst {dimension_numbers = #tpu.dot_dimension_numbers<[1], [0], [0], [1], [0, 0, 1, 1], [], []>} : vector<32x4xf32>, vector<4x16xf32>, vector<32x16xf32> -> vector<32x16xf32>
    %c0_9 = arith.constant 0 : index
    %c0_10 = arith.constant 0 : index
    %12 = vector.load %arg4[%c0_9, %c0_10] : memref<32x4xf32, #tpu.memory_space<vmem>>, vector<32x4xf32>
    %cst_11 = arith.constant dense<0.000000e+00> : vector<32x16xf32>
    %13 = tpu.matmul %12, %7, %cst_11 {dimension_numbers = #tpu.dot_dimension_numbers<[1], [0], [0], [1], [0, 0, 1, 1], [], []>} : vector<32x4xf32>, vector<4x16xf32>, vector<32x16xf32> -> vector<32x16xf32>
    %14 = arith.addf %11, %13 : vector<32x16xf32>
    %c0_12 = arith.constant 0 : index
    %c0_13 = arith.constant 0 : index
    %15 = vector.load %arg5[%c0_12, %c0_13] : memref<32x1xf32, #tpu.memory_space<vmem>>, vector<32x1xf32>
    %16 = vector.broadcast %15 : vector<32x1xf32> to vector<32x16xf32>
    %17 = arith.addf %14, %16 : vector<32x16xf32>
    %18 = math.tanh %17 : vector<32x16xf32>
    %c0_14 = arith.constant 0 : index
    %c0_15 = arith.constant 0 : index
    %19 = vector.load %arg6[%c0_14, %c0_15] : memref<32x1xf32, #tpu.memory_space<vmem>>, vector<32x1xf32>
    %20 = vector.broadcast %19 : vector<32x1xf32> to vector<32x16xf32>
    %21 = arith.mulf %20, %18 : vector<32x16xf32>
    %c0_16 = arith.constant 0 : index
    %c0_17 = arith.constant 0 : index
    %22 = vector.load %arg7[%c0_16, %c0_17] : memref<32x1xf32, #tpu.memory_space<vmem>>, vector<32x1xf32>
    %23 = vector.broadcast %22 : vector<32x1xf32> to vector<32x16xf32>
    %24 = arith.addf %21, %23 : vector<32x16xf32>
    %c0_18 = arith.constant 0 : index
    %c0_19 = arith.constant 0 : index
    %c0_20 = arith.constant 0 : index
    %25 = vector.load %arg8[%c0_18, %c0_19, %c0_20] : memref<1x32x16xf32, #tpu.memory_space<vmem>>, vector<1x32x16xf32>
    %26 = vector.shape_cast %25 : vector<1x32x16xf32> to vector<32x16xf32>
    %27 = vector.shape_cast %24 : vector<32x16xf32> to vector<1x32x16xf32>
    tpu.vector_store %arg8[%c0_18, %c0_19, %c0_20], %27 {strides = array<i32>} : memref<1x32x16xf32, #tpu.memory_space<vmem>>, vector<1x32x16xf32>,
    return
  }
  func.func @transform_0(%arg0: i32, %arg1: i32) -> (i32, i32, i32) {
    %c0_i32 = arith.constant 0 : i32
    %c0_i32_0 = arith.constant 0 : i32
    return %arg0, %c0_i32, %arg1 : i32, i32, i32
  }
  func.func @transform_1(%arg0: i32, %arg1: i32) -> (i32, i32) {
    %c0_i32 = arith.constant 0 : i32
    %c0_i32_0 = arith.constant 0 : i32
    %c0_i32_1 = arith.constant 0 : i32
    return %c0_i32, %c0_i32_0 : i32, i32
  }
  func.func @transform_2(%arg0: i32, %arg1: i32) -> (i32, i32) {
    %c0_i32 = arith.constant 0 : i32
    %c0_i32_0 = arith.constant 0 : i32
    %c0_i32_1 = arith.constant 0 : i32
    return %c0_i32, %c0_i32_0 : i32, i32
  }
  func.func @transform_3(%arg0: i32, %arg1: i32) -> (i32, i32) {
    %c0_i32 = arith.constant 0 : i32
    %c0_i32_0 = arith.constant 0 : i32
    %c0_i32_1 = arith.constant 0 : i32
    return %c0_i32, %c0_i32_0 : i32, i32
  }
  func.func @transform_4(%arg0: i32, %arg1: i32) -> (i32, i32) {
    %c0_i32 = arith.constant 0 : i32
    %c0_i32_0 = arith.constant 0 : i32
    %c0_i32_1 = arith.constant 0 : i32
    return %c0_i32, %c0_i32_0 : i32, i32
  }
  func.func @transform_5(%arg0: i32, %arg1: i32) -> (i32, i32) {
    %c0_i32 = arith.constant 0 : i32
    %c0_i32_0 = arith.constant 0 : i32
    %c0_i32_1 = arith.constant 0 : i32
    return %c0_i32, %c0_i32_0 : i32, i32
  }
  func.func @transform_6(%arg0: i32, %arg1: i32) -> (i32, i32, i32) {
    %c0_i32 = arith.constant 0 : i32
    %c0_i32_0 = arith.constant 0 : i32
    return %arg0, %c0_i32, %arg1 : i32, i32, i32
  }
}

module attributes {stable_mosaic.version = 11 : i64} {
  func.func @_convlayer_kernel_fused(%arg0: i32, %arg1: i32, %arg2: memref<1x4x16xf32, #tpu.memory_space<vmem>>, %arg3: memref<32x4xf32, #tpu.memory_space<vmem>>, %arg4: memref<32x4xf32, #tpu.memory_space<vmem>>, %arg5: memref<32x1xf32, #tpu.memory_space<vmem>>, %arg6: memref<32x1xf32, #tpu.memory_space<vmem>>, %arg7: memref<32x1xf32, #tpu.memory_space<vmem>>, %arg8: memref<1x32x16xf32, #tpu.memory_space<vmem>>, %arg9: memref<4x1xf32, #tpu.memory_space<vmem>>) attributes {dimension_semantics = [#tpu.dimension_semantics<parallel>, #tpu.dimension_semantics<arbitrary>], iteration_bounds = array<i64: 2, 1>, scalar_prefetch = 0 : i64, scratch_operands = 1 : i64, tpu.core_type = #tpu.core_type<tc>, window_params = [{transform_indices = @transform_0, window_bounds = array<i64: 1, 4, 16>}, {pipeline_mode = #tpu.pipeline_mode<synchronous>, transform_indices = @transform_1, window_bounds = array<i64: 32, 4>}, {pipeline_mode = #tpu.pipeline_mode<synchronous>, transform_indices = @transform_2, window_bounds = array<i64: 32, 4>}, {pipeline_mode = #tpu.pipeline_mode<synchronous>, transform_indices = @transform_3, window_bounds = array<i64: 32, 1>}, {pipeline_mode = #tpu.pipeline_mode<synchronous>, transform_indices = @transform_4, window_bounds = array<i64: 32, 1>}, {pipeline_mode = #tpu.pipeline_mode<synchronous>, transform_indices = @transform_5, window_bounds = array<i64: 32, 1>}, {transform_indices = @transform_6, window_bounds = array<i64: 1, 32, 16>}]} {
    %c0_i32 = arith.constant 0 : i32
    %0 = arith.cmpi eq, %arg1, %c0_i32 : i32
    %1 = arith.extui %0 : i1 to i32
    %c0_i32_0 = arith.constant 0 : i32
    %2 = arith.cmpi ne, %1, %c0_i32_0 : i32
    scf.if %2 {
      %cst_21 = arith.constant 0.000000e+00 : f32
      %28 = vector.broadcast %cst_21 : f32 to vector<4x1xf32>
      %c0_22 = arith.constant 0 : index
      %c0_23 = arith.constant 0 : index
      %29 = vector.load %arg9[%c0_22, %c0_23] : memref<4x1xf32, #tpu.memory_space<vmem>>, vector<4x1xf32>
      tpu.vector_store %arg9[%c0_22, %c0_23], %28 {strides = array<i32>} : memref<4x1xf32, #tpu.memory_space<vmem>>, vector<4x1xf32>,
    } else {
    }
    %c0 = arith.constant 0 : index
    %c0_1 = arith.constant 0 : index
    %c0_2 = arith.constant 0 : index
    %3 = vector.load %arg2[%c0, %c0_1, %c0_2] : memref<1x4x16xf32, #tpu.memory_space<vmem>>, vector<1x4x16xf32>
    %4 = vector.shape_cast %3 : vector<1x4x16xf32> to vector<4x16xf32>
    %c0_3 = arith.constant 0 : index
    %c0_4 = arith.constant 0 : index
    %5 = vector.load %arg9[%c0_3, %c0_4] : memref<4x1xf32, #tpu.memory_space<vmem>>, vector<4x1xf32>
    %6 = vector.extract_strided_slice %4 {offsets = [0, 0], sizes = [4, 15], strides = [1, 1]} : vector<4x16xf32> to vector<4x15xf32>
    %7 = tpu.concatenate %5, %6 in 1 : vector<4x1xf32>, vector<4x15xf32> -> vector<4x16xf32>
    %8 = vector.extract_strided_slice %4 {offsets = [0, 15], sizes = [4, 1], strides = [1, 1]} : vector<4x16xf32> to vector<4x1xf32>
    %c0_5 = arith.constant 0 : index
    %c0_6 = arith.constant 0 : index
    %9 = vector.load %arg9[%c0_5, %c0_6] : memref<4x1xf32, #tpu.memory_space<vmem>>, vector<4x1xf32>
    tpu.vector_store %arg9[%c0_5, %c0_6], %8 {strides = array<i32>} : memref<4x1xf32, #tpu.memory_space<vmem>>, vector<4x1xf32>,
    %c0_7 = arith.constant 0 : index
    %c0_8 = arith.constant 0 : index
    %10 = vector.load %arg3[%c0_7, %c0_8] : memref<32x4xf32, #tpu.memory_space<vmem>>, vector<32x4xf32>
    %cst = arith.constant dense<0.000000e+00> : vector<32x16xf32>
    %11 = tpu.matmul %10, %4, %cst {dimension_numbers = #tpu.dot_dimension_numbers<[1], [0], [0], [1], [0, 0, 1, 1], [], []>} : vector<32x4xf32>, vector<4x16xf32>, vector<32x16xf32> -> vector<32x16xf32>
    %c0_9 = arith.constant 0 : index
    %c0_10 = arith.constant 0 : index
    %12 = vector.load %arg4[%c0_9, %c0_10] : memref<32x4xf32, #tpu.memory_space<vmem>>, vector<32x4xf32>
    %cst_11 = arith.constant dense<0.000000e+00> : vector<32x16xf32>
    %13 = tpu.matmul %12, %7, %cst_11 {dimension_numbers = #tpu.dot_dimension_numbers<[1], [0], [0], [1], [0, 0, 1, 1], [], []>} : vector<32x4xf32>, vector<4x16xf32>, vector<32x16xf32> -> vector<32x16xf32>
    %14 = arith.addf %11, %13 : vector<32x16xf32>
    %c0_12 = arith.constant 0 : index
    %c0_13 = arith.constant 0 : index
    %15 = vector.load %arg5[%c0_12, %c0_13] : memref<32x1xf32, #tpu.memory_space<vmem>>, vector<32x1xf32>
    %16 = vector.broadcast %15 : vector<32x1xf32> to vector<32x16xf32>
    %17 = arith.addf %14, %16 : vector<32x16xf32>
    %18 = math.tanh %17 : vector<32x16xf32>
    %c0_14 = arith.constant 0 : index
    %c0_15 = arith.constant 0 : index
    %19 = vector.load %arg6[%c0_14, %c0_15] : memref<32x1xf32, #tpu.memory_space<vmem>>, vector<32x1xf32>
    %20 = vector.broadcast %19 : vector<32x1xf32> to vector<32x16xf32>
    %21 = arith.mulf %20, %18 : vector<32x16xf32>
    %c0_16 = arith.constant 0 : index
    %c0_17 = arith.constant 0 : index
    %22 = vector.load %arg7[%c0_16, %c0_17] : memref<32x1xf32, #tpu.memory_space<vmem>>, vector<32x1xf32>
    %23 = vector.broadcast %22 : vector<32x1xf32> to vector<32x16xf32>
    %24 = arith.addf %21, %23 : vector<32x16xf32>
    %c0_18 = arith.constant 0 : index
    %c0_19 = arith.constant 0 : index
    %c0_20 = arith.constant 0 : index
    %25 = vector.load %arg8[%c0_18, %c0_19, %c0_20] : memref<1x32x16xf32, #tpu.memory_space<vmem>>, vector<1x32x16xf32>
    %26 = vector.shape_cast %25 : vector<1x32x16xf32> to vector<32x16xf32>
    %27 = vector.shape_cast %24 : vector<32x16xf32> to vector<1x32x16xf32>
    tpu.vector_store %arg8[%c0_18, %c0_19, %c0_20], %27 {strides = array<i32>} : memref<1x32x16xf32, #tpu.memory_space<vmem>>, vector<1x32x16xf32>,
    return
  }
  func.func @transform_0(%arg0: i32, %arg1: i32) -> (i32, i32, i32) {
    %c0_i32 = arith.constant 0 : i32
    %c0_i32_0 = arith.constant 0 : i32
    return %arg0, %c0_i32, %arg1 : i32, i32, i32
  }
  func.func @transform_1(%arg0: i32, %arg1: i32) -> (i32, i32) {
    %c0_i32 = arith.constant 0 : i32
    %c0_i32_0 = arith.constant 0 : i32
    %c0_i32_1 = arith.constant 0 : i32
    return %c0_i32, %c0_i32_0 : i32, i32
  }
  func.func @transform_2(%arg0: i32, %arg1: i32) -> (i32, i32) {
    %c0_i32 = arith.constant 0 : i32
    %c0_i32_0 = arith.constant 0 : i32
    %c0_i32_1 = arith.constant 0 : i32
    return %c0_i32, %c0_i32_0 : i32, i32
  }
  func.func @transform_3(%arg0: i32, %arg1: i32) -> (i32, i32) {
    %c0_i32 = arith.constant 0 : i32
    %c0_i32_0 = arith.constant 0 : i32
    %c0_i32_1 = arith.constant 0 : i32
    return %c0_i32, %c0_i32_0 : i32, i32
  }
  func.func @transform_4(%arg0: i32, %arg1: i32) -> (i32, i32) {
    %c0_i32 = arith.constant 0 : i32
    %c0_i32_0 = arith.constant 0 : i32
    %c0_i32_1 = arith.constant 0 : i32
    return %c0_i32, %c0_i32_0 : i32, i32
  }
  func.func @transform_5(%arg0: i32, %arg1: i32) -> (i32, i32) {
    %c0_i32 = arith.constant 0 : i32
    %c0_i32_0 = arith.constant 0 : i32
    %c0_i32_1 = arith.constant 0 : i32
    return %c0_i32, %c0_i32_0 : i32, i32
  }
  func.func @transform_6(%arg0: i32, %arg1: i32) -> (i32, i32, i32) {
    %c0_i32 = arith.constant 0 : i32
    %c0_i32_0 = arith.constant 0 : i32
    return %arg0, %c0_i32, %arg1 : i32, i32, i32
  }
}

module attributes {stable_mosaic.version = 11 : i64} {
  func.func @_convlayer_kernel_twostream(%arg0: i32, %arg1: i32, %arg2: memref<1x4x16xf32, #tpu.memory_space<vmem>>, %arg3: memref<1x4x16xf32, #tpu.memory_space<vmem>>, %arg4: memref<32x4xf32, #tpu.memory_space<vmem>>, %arg5: memref<32x4xf32, #tpu.memory_space<vmem>>, %arg6: memref<32x1xf32, #tpu.memory_space<vmem>>, %arg7: memref<32x1xf32, #tpu.memory_space<vmem>>, %arg8: memref<32x1xf32, #tpu.memory_space<vmem>>, %arg9: memref<1x32x16xf32, #tpu.memory_space<vmem>>) attributes {dimension_semantics = [#tpu.dimension_semantics<parallel>, #tpu.dimension_semantics<parallel>], iteration_bounds = array<i64: 2, 1>, scalar_prefetch = 0 : i64, scratch_operands = 0 : i64, tpu.core_type = #tpu.core_type<tc>, window_params = [{transform_indices = @transform_0, window_bounds = array<i64: 1, 4, 16>}, {transform_indices = @transform_1, window_bounds = array<i64: 1, 4, 16>}, {pipeline_mode = #tpu.pipeline_mode<synchronous>, transform_indices = @transform_2, window_bounds = array<i64: 32, 4>}, {pipeline_mode = #tpu.pipeline_mode<synchronous>, transform_indices = @transform_3, window_bounds = array<i64: 32, 4>}, {pipeline_mode = #tpu.pipeline_mode<synchronous>, transform_indices = @transform_4, window_bounds = array<i64: 32, 1>}, {pipeline_mode = #tpu.pipeline_mode<synchronous>, transform_indices = @transform_5, window_bounds = array<i64: 32, 1>}, {pipeline_mode = #tpu.pipeline_mode<synchronous>, transform_indices = @transform_6, window_bounds = array<i64: 32, 1>}, {transform_indices = @transform_7, window_bounds = array<i64: 1, 32, 16>}]} {
    %c0 = arith.constant 0 : index
    %c0_0 = arith.constant 0 : index
    %0 = vector.load %arg4[%c0, %c0_0] : memref<32x4xf32, #tpu.memory_space<vmem>>, vector<32x4xf32>
    %c0_1 = arith.constant 0 : index
    %c0_2 = arith.constant 0 : index
    %c0_3 = arith.constant 0 : index
    %1 = vector.load %arg2[%c0_1, %c0_2, %c0_3] : memref<1x4x16xf32, #tpu.memory_space<vmem>>, vector<1x4x16xf32>
    %2 = vector.shape_cast %1 : vector<1x4x16xf32> to vector<4x16xf32>
    %cst = arith.constant dense<0.000000e+00> : vector<32x16xf32>
    %3 = tpu.matmul %0, %2, %cst {dimension_numbers = #tpu.dot_dimension_numbers<[1], [0], [0], [1], [0, 0, 1, 1], [], []>} : vector<32x4xf32>, vector<4x16xf32>, vector<32x16xf32> -> vector<32x16xf32>
    %c0_4 = arith.constant 0 : index
    %c0_5 = arith.constant 0 : index
    %4 = vector.load %arg5[%c0_4, %c0_5] : memref<32x4xf32, #tpu.memory_space<vmem>>, vector<32x4xf32>
    %c0_6 = arith.constant 0 : index
    %c0_7 = arith.constant 0 : index
    %c0_8 = arith.constant 0 : index
    %5 = vector.load %arg3[%c0_6, %c0_7, %c0_8] : memref<1x4x16xf32, #tpu.memory_space<vmem>>, vector<1x4x16xf32>
    %6 = vector.shape_cast %5 : vector<1x4x16xf32> to vector<4x16xf32>
    %cst_9 = arith.constant dense<0.000000e+00> : vector<32x16xf32>
    %7 = tpu.matmul %4, %6, %cst_9 {dimension_numbers = #tpu.dot_dimension_numbers<[1], [0], [0], [1], [0, 0, 1, 1], [], []>} : vector<32x4xf32>, vector<4x16xf32>, vector<32x16xf32> -> vector<32x16xf32>
    %8 = arith.addf %3, %7 : vector<32x16xf32>
    %c0_10 = arith.constant 0 : index
    %c0_11 = arith.constant 0 : index
    %9 = vector.load %arg6[%c0_10, %c0_11] : memref<32x1xf32, #tpu.memory_space<vmem>>, vector<32x1xf32>
    %10 = vector.broadcast %9 : vector<32x1xf32> to vector<32x16xf32>
    %11 = arith.addf %8, %10 : vector<32x16xf32>
    %12 = math.tanh %11 : vector<32x16xf32>
    %c0_12 = arith.constant 0 : index
    %c0_13 = arith.constant 0 : index
    %13 = vector.load %arg7[%c0_12, %c0_13] : memref<32x1xf32, #tpu.memory_space<vmem>>, vector<32x1xf32>
    %14 = vector.broadcast %13 : vector<32x1xf32> to vector<32x16xf32>
    %15 = arith.mulf %14, %12 : vector<32x16xf32>
    %c0_14 = arith.constant 0 : index
    %c0_15 = arith.constant 0 : index
    %16 = vector.load %arg8[%c0_14, %c0_15] : memref<32x1xf32, #tpu.memory_space<vmem>>, vector<32x1xf32>
    %17 = vector.broadcast %16 : vector<32x1xf32> to vector<32x16xf32>
    %18 = arith.addf %15, %17 : vector<32x16xf32>
    %c0_16 = arith.constant 0 : index
    %c0_17 = arith.constant 0 : index
    %c0_18 = arith.constant 0 : index
    %19 = vector.load %arg9[%c0_16, %c0_17, %c0_18] : memref<1x32x16xf32, #tpu.memory_space<vmem>>, vector<1x32x16xf32>
    %20 = vector.shape_cast %19 : vector<1x32x16xf32> to vector<32x16xf32>
    %21 = vector.shape_cast %18 : vector<32x16xf32> to vector<1x32x16xf32>
    tpu.vector_store %arg9[%c0_16, %c0_17, %c0_18], %21 {strides = array<i32>} : memref<1x32x16xf32, #tpu.memory_space<vmem>>, vector<1x32x16xf32>,
    return
  }
  func.func @transform_0(%arg0: i32, %arg1: i32) -> (i32, i32, i32) {
    %c0_i32 = arith.constant 0 : i32
    %c0_i32_0 = arith.constant 0 : i32
    return %arg0, %c0_i32, %arg1 : i32, i32, i32
  }
  func.func @transform_1(%arg0: i32, %arg1: i32) -> (i32, i32, i32) {
    %c0_i32 = arith.constant 0 : i32
    %c0_i32_0 = arith.constant 0 : i32
    return %arg0, %c0_i32, %arg1 : i32, i32, i32
  }
  func.func @transform_2(%arg0: i32, %arg1: i32) -> (i32, i32) {
    %c0_i32 = arith.constant 0 : i32
    %c0_i32_0 = arith.constant 0 : i32
    %c0_i32_1 = arith.constant 0 : i32
    return %c0_i32, %c0_i32_0 : i32, i32
  }
  func.func @transform_3(%arg0: i32, %arg1: i32) -> (i32, i32) {
    %c0_i32 = arith.constant 0 : i32
    %c0_i32_0 = arith.constant 0 : i32
    %c0_i32_1 = arith.constant 0 : i32
    return %c0_i32, %c0_i32_0 : i32, i32
  }
  func.func @transform_4(%arg0: i32, %arg1: i32) -> (i32, i32) {
    %c0_i32 = arith.constant 0 : i32
    %c0_i32_0 = arith.constant 0 : i32
    %c0_i32_1 = arith.constant 0 : i32
    return %c0_i32, %c0_i32_0 : i32, i32
  }
  func.func @transform_5(%arg0: i32, %arg1: i32) -> (i32, i32) {
    %c0_i32 = arith.constant 0 : i32
    %c0_i32_0 = arith.constant 0 : i32
    %c0_i32_1 = arith.constant 0 : i32
    return %c0_i32, %c0_i32_0 : i32, i32
  }
  func.func @transform_6(%arg0: i32, %arg1: i32) -> (i32, i32) {
    %c0_i32 = arith.constant 0 : i32
    %c0_i32_0 = arith.constant 0 : i32
    %c0_i32_1 = arith.constant 0 : i32
    return %c0_i32, %c0_i32_0 : i32, i32
  }
  func.func @transform_7(%arg0: i32, %arg1: i32) -> (i32, i32, i32) {
    %c0_i32 = arith.constant 0 : i32
    %c0_i32_0 = arith.constant 0 : i32
    return %arg0, %c0_i32, %arg1 : i32, i32, i32
  }
}

</mosaic_0001>

<llo_original>
// kernel: conv_layer_forward.1
$region0: #{conv_layer_forward.1}
  #allocation0 [shape = 'u32[]', space=smem, size = 0x4, offset = 0x4, fixed_abs, tag = 'smem constant byte address 0x4 - core index']
  #allocation1 [shape = 'u32[144,128]{1,0:T(1,128)}', space=vmem, size = 0x12000, scoped, tag = 'internal scratch']
  #allocation2 [shape = 'f32[4,1]{1,0:T(4,128)}', space=vmem, size = 0x800, scoped, tag = 'scratch operand']
  %s0 = inlined_call_operand.vmem [shape: f32[2,4,16], index: 0, kind: input, shape index: {}]
  %s1 = inlined_call_operand.vmem [shape: f32[32,4], index: 1, kind: input, shape index: {}]
  %s2 = inlined_call_operand.vmem [shape: f32[32,4], index: 2, kind: input, shape index: {}]
  %s3 = inlined_call_operand.vmem [shape: f32[32,1], index: 3, kind: input, shape index: {}]
  %s4 = inlined_call_operand.vmem [shape: f32[32,1], index: 4, kind: input, shape index: {}]
  %s5 = inlined_call_operand.vmem [shape: f32[32,1], index: 5, kind: input, shape index: {}]
  %s6 = inlined_call_operand.vmem [shape: f32[2,32,16], index: 6, kind: output, shape index: {}]
  %s7 = sld [smem:[#allocation0]]
  $region61: #{conv_layer_forward.1} parent=0
    _
  %s9 = ssub.s32 1, %s7
  %s10 = scalar_select 0, %s9, %s7
  loop: start=0, step=1, limit=4
  $region2: #{conv_layer_forward.1} parent=0 // loop_pre_header
    _
  $region3: #{conv_layer_forward.1} parent=0 // loop_header
    %s12 = sphi 0, %s16
    %p13 = scmp.ge.s32.totalorder %s12, 4
    %s19 = sphi 0, %s31
    %s20 = sphi 0, %s27
    %s21 = sphi 0, %s19
    %s22 = sphi 0, %s20
    %s23 = sphi 0, %s21
    %s24 = sphi 0, %s22
    %s36 = sphi 0, %s38
    %s39 = sphi 0, %s36
    %s40 = sphi 0, %s39
    %s56 = sphi 0, %s40
    %s60 = sphi 0, %s60
    %s62 = sphi 0, %s60
    %s63 = sphi 0, %s62
    %s77 = sphi 0, %s63
    %s81 = sphi 0, %s81
    %s83 = sphi 0, %s81
    %s84 = sphi 0, %s83
    %s98 = sphi 0, %s84
    %s102 = sphi 0, %s102
    %s104 = sphi 0, %s102
    %s105 = sphi 0, %s104
    %s119 = sphi 0, %s105
    %s123 = sphi 0, %s123
    %s125 = sphi 0, %s123
    %s126 = sphi 0, %s125
    %s140 = sphi 0, %s126
    %s144 = sphi 0, %s144
    %s146 = sphi 0, %s144
    %s147 = sphi 0, %s146
    %s161 = sphi 0, %s147
    %s169 = sphi 0, %s171
    %s172 = sphi 0, %s169
    %s173 = sphi 0, %s172
    %s189 = sphi 0, %s173
  $region4: #{conv_layer_forward.1} parent=0 // loop_header_branch
    %15 = sbr.rel (%p13) target = $region8
  $region5: #{conv_layer_forward.1} parent=0 // loop_body
    %s17 = ssub.s32 %s12, 1
    %s18 = ssub.s32 %s12, 2
    %s25 = sadd.s32 1, %s20
    %p26 = scmp.ge.s32.totalorder %s25, 1
    %s27 = scalar_select %p26, 0, %s25
    %s28 = sadd.s32 1, %s19
    %s29 = scalar_select %p26, %s28, %s19
    %p30 = scmp.ge.s32.totalorder %s29, 2
    %s31 = scalar_select %p30, 0, %s29
    %s32 = ssub.s32 %s19, %s31
    %s33 = ssub.s32 %s20, %s27
    %s34 = sor.u32 %s32, %s33
    %p35 = scmp.eq.s32.totalorder %s34, 0
    %s37 = sadd.s32 %s36, 1
    %s38 = scalar_select %p35, %s36, %s37
    %p41 = pneg %p35
    %p42 = scmp.eq.s32.totalorder %s12, 1
    %p43 = por %p41, %p42
    %p44 = scmp.ne.s32.totalorder %s36, %s39
    %p45 = scmp.eq.s32.totalorder %s12, 0
    %p46 = por %p44, %p45
    %p47 = scmp.ne.s32.totalorder %s36, %s39
    %p48 = scmp.eq.s32.totalorder %s17, 1
    %p49 = por %p47, %p48
    %p50 = scmp.ne.s32.totalorder %s39, %s40
    %p51 = scmp.eq.s32.totalorder %s17, 0
    %p52 = por %p50, %p51
    %p53 = scmp.ne.s32.totalorder %s39, %s40
    %p54 = scmp.eq.s32.totalorder %s18, 1
    %p55 = por %p53, %p54
    %p57 = scmp.ne.s32.totalorder %s40, %s56
    %p58 = scmp.eq.s32.totalorder %s18, 0
    %p59 = por %p57, %p58
    %s61 = sadd.s32 %s60, 1
    %p64 = scmp.eq.s32.totalorder %s12, 1
    %p65 = scmp.ne.s32.totalorder %s60, %s62
    %p66 = scmp.eq.s32.totalorder %s12, 0
    %p67 = por %p65, %p66
    %p68 = scmp.ne.s32.totalorder %s60, %s62
    %p69 = scmp.eq.s32.totalorder %s17, 1
    %p70 = por %p68, %p69
    %p71 = scmp.ne.s32.totalorder %s62, %s63
    %p72 = scmp.eq.s32.totalorder %s17, 0
    %p73 = por %p71, %p72
    %p74 = scmp.ne.s32.totalorder %s62, %s63
    %p75 = scmp.eq.s32.totalorder %s18, 1
    %p76 = por %p74, %p75
    %p78 = scmp.ne.s32.totalorder %s63, %s77
    %p79 = scmp.eq.s32.totalorder %s18, 0
    %p80 = por %p78, %p79
    %s82 = sadd.s32 %s81, 1
    %p85 = scmp.eq.s32.totalorder %s12, 1
    %p86 = scmp.ne.s32.totalorder %s81, %s83
    %p87 = scmp.eq.s32.totalorder %s12, 0
    %p88 = por %p86, %p87
    %p89 = scmp.ne.s32.totalorder %s81, %s83
    %p90 = scmp.eq.s32.totalorder %s17, 1
    %p91 = por %p89, %p90
    %p92 = scmp.ne.s32.totalorder %s83, %s84
    %p93 = scmp.eq.s32.totalorder %s17, 0
    %p94 = por %p92, %p93
    %p95 = scmp.ne.s32.totalorder %s83, %s84
    %p96 = scmp.eq.s32.totalorder %s18, 1
    %p97 = por %p95, %p96
    %p99 = scmp.ne.s32.totalorder %s84, %s98
    %p100 = scmp.eq.s32.totalorder %s18, 0
    %p101 = por %p99, %p100
    %s103 = sadd.s32 %s102, 1
    %p106 = scmp.eq.s32.totalorder %s12, 1
    %p107 = scmp.ne.s32.totalorder %s102, %s104
    %p108 = scmp.eq.s32.totalorder %s12, 0
    %p109 = por %p107, %p108
    %p110 = scmp.ne.s32.totalorder %s102, %s104
    %p111 = scmp.eq.s32.totalorder %s17, 1
    %p112 = por %p110, %p111
    %p113 = scmp.ne.s32.totalorder %s104, %s105
    %p114 = scmp.eq.s32.totalorder %s17, 0
    %p115 = por %p113, %p114
    %p116 = scmp.ne.s32.totalorder %s104, %s105
    %p117 = scmp.eq.s32.totalorder %s18, 1
    %p118 = por %p116, %p117
    %p120 = scmp.ne.s32.totalorder %s105, %s119
    %p121 = scmp.eq.s32.totalorder %s18, 0
    %p122 = por %p120, %p121
    %s124 = sadd.s32 %s123, 1
    %p127 = scmp.eq.s32.totalorder %s12, 1
    %p128 = scmp.ne.s32.totalorder %s123, %s125
    %p129 = scmp.eq.s32.totalorder %s12, 0
    %p130 = por %p128, %p129
    %p131 = scmp.ne.s32.totalorder %s123, %s125
    %p132 = scmp.eq.s32.totalorder %s17, 1
    %p133 = por %p131, %p132
    %p134 = scmp.ne.s32.totalorder %s125, %s126
    %p135 = scmp.eq.s32.totalorder %s17, 0
    %p136 = por %p134, %p135
    %p137 = scmp.ne.s32.totalorder %s125, %s126
    %p138 = scmp.eq.s32.totalorder %s18, 1
    %p139 = por %p137, %p138
    %p141 = scmp.ne.s32.totalorder %s126, %s140
    %p142 = scmp.eq.s32.totalorder %s18, 0
    %p143 = por %p141, %p142
    %s145 = sadd.s32 %s144, 1
    %p148 = scmp.eq.s32.totalorder %s12, 1
    %p149 = scmp.ne.s32.totalorder %s144, %s146
    %p150 = scmp.eq.s32.totalorder %s12, 0
    %p151 = por %p149, %p150
    %p152 = scmp.ne.s32.totalorder %s144, %s146
    %p153 = scmp.eq.s32.totalorder %s17, 1
    %p154 = por %p152, %p153
    %p155 = scmp.ne.s32.totalorder %s146, %s147
    %p156 = scmp.eq.s32.totalorder %s17, 0
    %p157 = por %p155, %p156
    %p158 = scmp.ne.s32.totalorder %s146, %s147
    %p159 = scmp.eq.s32.totalorder %s18, 1
    %p160 = por %p158, %p159
    %p162 = scmp.ne.s32.totalorder %s147, %s161
    %p163 = scmp.eq.s32.totalorder %s18, 0
    %p164 = por %p162, %p163
    %s165 = ssub.s32 %s19, %s31
    %s166 = ssub.s32 %s20, %s27
    %s167 = sor.u32 %s165, %s166
    %p168 = scmp.eq.s32.totalorder %s167, 0
    %s170 = sadd.s32 %s169, 1
    %s171 = scalar_select %p168, %s169, %s170
    %p174 = pneg %p168
    %p175 = scmp.eq.s32.totalorder %s12, 1
    %p176 = por %p174, %p175
    %p177 = scmp.ne.s32.totalorder %s169, %s172
    %p178 = scmp.eq.s32.totalorder %s12, 0
    %p179 = por %p177, %p178
    %p180 = scmp.ne.s32.totalorder %s169, %s172
    %p181 = scmp.eq.s32.totalorder %s17, 1
    %p182 = por %p180, %p181
    %p183 = scmp.ne.s32.totalorder %s172, %s173
    %p184 = scmp.eq.s32.totalorder %s17, 0
    %p185 = por %p183, %p184
    %p186 = scmp.ne.s32.totalorder %s172, %s173
    %p187 = scmp.eq.s32.totalorder %s18, 1
    %p188 = por %p186, %p187
    %p190 = scmp.ne.s32.totalorder %s173, %s189
    %p191 = scmp.eq.s32.totalorder %s18, 0
    %p192 = por %p190, %p191
    %p193 = scmp.le.s32.totalorder 1, %s12
    %p194 = scmp.lt.s32.totalorder %s12, 3
    %p195 = pnand %p193, %p194
    %p196 = pneg %p195
    // Predicated region
    $region9: #{conv_layer_forward.1} parent=5 // pred_check
      _
    $region10: #{conv_layer_forward.1} parent=5 // pred_check_branch
      %198 = sbr.rel (%p195) target = $region12
    $region11: #{conv_layer_forward.1} parent=5 // pred_region
      %s199 = ssub.s32 %s12, 1
      // Predicated region
      $region13: #{conv_layer_forward.1} parent=11 // pred_check
        %p200 = pneg %p73
      $region14: #{conv_layer_forward.1} parent=11 // pred_check_branch
        %202 = sbr.rel (%p200) target = $region16
      $region15: #{conv_layer_forward.1} parent=11 // pred_region
        _
      $region16: #{conv_layer_forward.1} parent=11 // pred_fallthru
        _
      // Predicated region
      $region17: #{conv_layer_forward.1} parent=11 // pred_check
        %p203 = pneg %p94
      $region18: #{conv_layer_forward.1} parent=11 // pred_check_branch
        %205 = sbr.rel (%p203) target = $region20
      $region19: #{conv_layer_forward.1} parent=11 // pred_region
        _
      $region20: #{conv_layer_forward.1} parent=11 // pred_fallthru
        _
      // Predicated region
      $region21: #{conv_layer_forward.1} parent=11 // pred_check
        %p206 = pneg %p115
      $region22: #{conv_layer_forward.1} parent=11 // pred_check_branch
        %208 = sbr.rel (%p206) target = $region24
      $region23: #{conv_layer_forward.1} parent=11 // pred_region
        _
      $region24: #{conv_layer_forward.1} parent=11 // pred_fallthru
        _
      // Predicated region
      $region25: #{conv_layer_forward.1} parent=11 // pred_check
        %p209 = pneg %p136
      $region26: #{conv_layer_forward.1} parent=11 // pred_check_branch
        %211 = sbr.rel (%p209) target = $region28
      $region27: #{conv_layer_forward.1} parent=11 // pred_region
        _
      $region28: #{conv_layer_forward.1} parent=11 // pred_fallthru
        _
      // Predicated region
      $region29: #{conv_layer_forward.1} parent=11 // pred_check
        %p212 = pneg %p157
      $region30: #{conv_layer_forward.1} parent=11 // pred_check_branch
        %214 = sbr.rel (%p212) target = $region32
      $region31: #{conv_layer_forward.1} parent=11 // pred_region
        _
      $region32: #{conv_layer_forward.1} parent=11 // pred_fallthru
        _
    $region12: #{conv_layer_forward.1} parent=5 // pred_fallthru
      _
    %p215 = scmp.lt.s32.totalorder %s12, 2
    // Predicated region
    $region33: #{conv_layer_forward.1} parent=5 // pred_check
      %p216 = pneg %p215
    $region34: #{conv_layer_forward.1} parent=5 // pred_check_branch
      %218 = sbr.rel (%p216) target = $region36
    $region35: #{conv_layer_forward.1} parent=5 // pred_region
      // Predicated region
      $region37: #{conv_layer_forward.1} parent=35 // pred_check
        %p219 = pneg %p46
      $region38: #{conv_layer_forward.1} parent=35 // pred_check_branch
        %221 = sbr.rel (%p219) target = $region40
      $region39: #{conv_layer_forward.1} parent=35 // pred_region
        %p222 = scmp.lt.s32.totalorder %s19, 1
        %s223 = scalar_select %p222, %s19, 1
        %p224 = scmp.lt.s32.totalorder %s20, 0
        %s225 = scalar_select %p224, %s20, 0
        %s226 = sadd.s32 %s225, %s223
        %s227 = smul.addr %s226, 4
        %s228 = scalar_lea.vmem %s0, %s227
      $region40: #{conv_layer_forward.1} parent=35 // pred_fallthru
        _
    $region36: #{conv_layer_forward.1} parent=5 // pred_fallthru
      _
    %p229 = scmp.le.s32.totalorder 1, %s12
    %p230 = scmp.lt.s32.totalorder %s12, 3
    %p231 = pnand %p229, %p230
    %p232 = pneg %p231
    // Predicated region
    $region41: #{conv_layer_forward.1} parent=5 // pred_check
      _
    $region42: #{conv_layer_forward.1} parent=5 // pred_check_branch
      %234 = sbr.rel (%p231) target = $region44
    $region43: #{conv_layer_forward.1} parent=5 // pred_region
      %s235 = ssub.s32 %s12, 1
      %p236 = scmp.lt.s32.totalorder %s21, 1
      %s237 = scalar_select %p236, %s21, 1
      %p238 = scmp.lt.s32.totalorder %s22, 0
      %s239 = scalar_select %p238, %s22, 0
      %s240 = sadd.s32 %s239, %s237
      %s241 = smul.addr %s240, 4
      %s242 = scalar_lea.vmem %s0, %s241
      %p243 = pneg %p52
      %p244 = pneg %p49
      %p245 = pneg %p73
      %p246 = pneg %p70
      %p247 = pneg %p94
      %p248 = pneg %p91
      %p249 = pneg %p115
      %p250 = pneg %p112
      %p251 = pneg %p136
      %p252 = pneg %p133
      %p253 = pneg %p157
      %p254 = pneg %p154
      %p255 = pneg %p185
      %p256 = pneg %p182
      %p257 = scmp.lt.s32.totalorder %s21, 1
      %s258 = scalar_select %p257, %s21, 1
      %p259 = scmp.lt.s32.totalorder %s22, 0
      %s260 = scalar_select %p259, %s22, 0
      %s261 = smul.addr %s258, 4
      %s262 = sadd.s32 %s260, %s261
      %s263 = smul.addr %s262, 8
      %s264 = scalar_lea.vmem %s6, %s263
      %p265 = scmp.lt.s32.totalorder %s21, 1
      %s266 = scalar_select %p265, %s21, 1
      %p267 = scmp.lt.s32.totalorder %s22, 0
      %s268 = scalar_select %p267, %s22, 0
      %s269 = sadd.s32 %s268, %s266
      %s270 = smul.addr %s269, 4
      %s271 = scalar_lea.vmem %s0, %s270
      %p272 = scmp.lt.s32.totalorder %s21, 1
      %s273 = scalar_select %p272, %s21, 1
      %p274 = scmp.lt.s32.totalorder %s22, 0
      %s275 = scalar_select %p274, %s22, 0
      %s276 = smul.addr %s273, 4
      %s277 = sadd.s32 %s275, %s276
      %s278 = smul.addr %s277, 8
      %s279 = scalar_lea.vmem %s6, %s278
      %p280 = scmp.eq.s32.totalorder %s22, 0
      // Predicated region
      $region45: #{conv_layer_forward.1} parent=43 // pred_check
        %p281 = pneg %p280
      $region46: #{conv_layer_forward.1} parent=43 // pred_check_branch
        %283 = sbr.rel (%p281) target = $region48
      $region47: #{conv_layer_forward.1} parent=43 // pred_region
        %vm284 = vcmask 3072
        %285 = vst.msk [vmem:[#allocation2] sm:$0xf] %vm284, 0.0
      $region48: #{conv_layer_forward.1} parent=43 // pred_fallthru
        _
      %v286 = vld [vmem:[%s271] sm:$0xf]
      %v287 = vld [vmem:[#allocation2] sm:$0xf]
      %289 = vrot.lane.b32.xlu0 %v286, 1
      %v290 = vpop.permute.xlu0 %289
      %vm292 = vcmask 7168
      %v293 = vsel %vm292, %v287, %v290
      %294 = vrot.lane.b32.xlu0 %v286, 113
      %v295 = vpop.permute.xlu0 %294
      %vm297 = vcmask 3072
      %298 = vst.msk [vmem:[#allocation2] sm:$0xf] %vm297, %v295
      %v299 = vld [vmem:[%s1] sm:$0xff]
      %v300 = vld [vmem:[%s1 + $0x8] sm:$0xff]
      %v301 = vld [vmem:[%s1 + $0x10] sm:$0xff]
      %v302 = vld [vmem:[%s1 + $0x18] sm:$0xff]
      %v303 = vld [vmem:[%s2] sm:$0xff]
      %v304 = vld [vmem:[%s2 + $0x8] sm:$0xff]
      %v305 = vld [vmem:[%s2 + $0x10] sm:$0xff]
      %v306 = vld [vmem:[%s2 + $0x18] sm:$0xff]
      %vm307 = vcmask 31744
      %v309 = vsel %vm307, %v303, 0
      %v312 = vsel %vm307, %v304, 0
      %v315 = vsel %vm307, %v305, 0
      %v318 = vsel %vm307, %v306, 0
      %vm320 = vcmask 1043456
      %v322 = vsel %vm320, %v293, 0
      %324 = vmatprep.subr.mxu0 0.0
      %325 = vmatpush1.msra.mxu0 %v322
      %326 = vmatprep.subr.mxu0 0.0
      %327 = vmatpush1.msra.mxu0 0.0
      %328 = vmatprep.subr.mxu0 0.0
      %329 = vmatpush1.msra.mxu0 0.0
      %330 = vmatprep.subr.mxu0 0.0
      %331 = vmatpush1.msra.mxu0 0.0
      %332 = vmatprep.subr.mxu0 0.0
      %333 = vmatpush1.msra.mxu0 0.0
      %334 = vmatprep.subr.mxu0 0.0
      %335 = vmatpush1.msra.mxu0 0.0
      %336 = vmatprep.subr.mxu0 0.0
      %337 = vmatpush1.msra.mxu0 0.0
      %338 = vmatprep.subr.mxu0 0.0
      %339 = vmatpush1.msra.mxu0 0.0
      %340 = vmatprep.subr.mxu0 0.0
      %341 = vmatpush1.msra.mxu0 0.0
      %342 = vmatprep.subr.mxu0 0.0
      %343 = vmatpush1.msra.mxu0 0.0
      %344 = vmatprep.subr.mxu0 0.0
      %345 = vmatpush1.msra.mxu0 0.0
      %346 = vmatprep.subr.mxu0 0.0
      %347 = vmatpush1.msra.mxu0 0.0
      %348 = vmatprep.subr.mxu0 0.0
      %349 = vmatpush1.msra.mxu0 0.0
      %350 = vmatprep.subr.mxu0 0.0
      %351 = vmatpush1.msra.mxu0 0.0
      %352 = vmatprep.subr.mxu0 0.0
      %353 = vmatpush1.msra.mxu0 0.0
      %354 = vmatprep.subr.mxu0 0.0
      %355 = vmatpush1.msra.mxu0 0.0
      %356 = vmatprep.subr.mxu0 0.0
      %357 = vmatpush1.msra.mxu0 0.0
      %358 = vmatprep.subr.mxu0 0.0
      %359 = vmatpush1.msra.mxu0 0.0
      %360 = vmatprep.subr.mxu0 0.0
      %361 = vmatpush1.msra.mxu0 0.0
      %362 = vmatprep.subr.mxu0 0.0
      %363 = vmatpush1.msra.mxu0 0.0
      %364 = vmatprep.subr.mxu0 0.0
      %365 = vmatpush1.msra.mxu0 0.0
      %366 = vmatprep.subr.mxu0 0.0
      %367 = vmatpush1.msra.mxu0 0.0
      %368 = vmatprep.subr.mxu0 0.0
      %369 = vmatpush1.msra.mxu0 0.0
      %370 = vmatprep.subr.mxu0 0.0
      %371 = vmatpush1.msra.mxu0 0.0
      %372 = vmatprep.subr.mxu0 0.0
      %373 = vmatpush1.msra.mxu0 0.0
      %374 = vmatprep.subr.mxu0 0.0
      %375 = vmatpush1.msra.mxu0 0.0
      %376 = vmatprep.subr.mxu0 0.0
      %377 = vmatpush1.msra.mxu0 0.0
      %378 = vmatprep.subr.mxu0 0.0
      %379 = vmatpush1.msra.mxu0 0.0
      %380 = vmatprep.subr.mxu0 0.0
      %381 = vmatpush1.msra.mxu0 0.0
      %382 = vmatprep.subr.mxu0 0.0
      %383 = vmatpush1.msra.mxu0 0.0
      %384 = vmatprep.subr.mxu0 0.0
      %385 = vmatpush1.msra.mxu0 0.0
      %386 = vmatprep.subr.mxu0 0.0
      %387 = vmatpush1.msra.mxu0 0.0
      %388 = vmatprep.mubr.f32.mxu0 0.0
      %389 = vmatmul.mubr.f32.gmra.mrb[0].mxu0 %v309
      %v390 = vpop.f32.mrb[0].mxu0
      %v391 = vadd.f32 0.0, %v390
      %v392 = vpop.f32.mrb[0].mxu0
      %393 = vmatprep.mubr.f32.mxu0 0.0
      %394 = vmatmul.mubr.f32.gmra.mrb[0].mxu0 %v312
      %v395 = vpop.f32.mrb[0].mxu0
      %v396 = vadd.f32 0.0, %v395
      %v397 = vpop.f32.mrb[0].mxu0
      %398 = vmatprep.mubr.f32.mxu0 0.0
      %399 = vmatmul.mubr.f32.gmra.mrb[0].mxu0 %v315
      %v400 = vpop.f32.mrb[0].mxu0
      %v401 = vadd.f32 0.0, %v400
      %v402 = vpop.f32.mrb[0].mxu0
      %403 = vmatprep.mubr.f32.mxu0 0.0
      %404 = vmatmul.mubr.f32.gmra.mrb[0].mxu0 %v318
      %v405 = vpop.f32.mrb[0].mxu0
      %v406 = vadd.f32 0.0, %v405
      %v407 = vpop.f32.mrb[0].mxu0
      %408 = vdwg.mxu0
      %v410 = vsel %vm307, %v299, 0
      %v413 = vsel %vm307, %v300, 0
      %v416 = vsel %vm307, %v301, 0
      %v419 = vsel %vm307, %v302, 0
      %v421 = vsel %vm320, %v286, 0
      %423 = vmatprep.subr.mxu0 0.0
      %424 = vmatpush1.msra.mxu0 %v421
      %425 = vmatprep.subr.mxu0 0.0
      %426 = vmatpush1.msra.mxu0 0.0
      %427 = vmatprep.subr.mxu0 0.0
      %428 = vmatpush1.msra.mxu0 0.0
      %429 = vmatprep.subr.mxu0 0.0
      %430 = vmatpush1.msra.mxu0 0.0
      %431 = vmatprep.subr.mxu0 0.0
      %432 = vmatpush1.msra.mxu0 0.0
      %433 = vmatprep.subr.mxu0 0.0
      %434 = vmatpush1.msra.mxu0 0.0
      %435 = vmatprep.subr.mxu0 0.0
      %436 = vmatpush1.msra.mxu0 0.0
      %437 = vmatprep.subr.mxu0 0.0
      %438 = vmatpush1.msra.mxu0 0.0
      %439 = vmatprep.subr.mxu0 0.0
      %440 = vmatpush1.msra.mxu0 0.0
      %441 = vmatprep.subr.mxu0 0.0
      %442 = vmatpush1.msra.mxu0 0.0
      %443 = vmatprep.subr.mxu0 0.0
      %444 = vmatpush1.msra.mxu0 0.0
      %445 = vmatprep.subr.mxu0 0.0
      %446 = vmatpush1.msra.mxu0 0.0
      %447 = vmatprep.subr.mxu0 0.0
      %448 = vmatpush1.msra.mxu0 0.0
      %449 = vmatprep.subr.mxu0 0.0
      %450 = vmatpush1.msra.mxu0 0.0
      %451 = vmatprep.subr.mxu0 0.0
      %452 = vmatpush1.msra.mxu0 0.0
      %453 = vmatprep.subr.mxu0 0.0
      %454 = vmatpush1.msra.mxu0 0.0
      %455 = vmatprep.subr.mxu0 0.0
      %456 = vmatpush1.msra.mxu0 0.0
      %457 = vmatprep.subr.mxu0 0.0
      %458 = vmatpush1.msra.mxu0 0.0
      %459 = vmatprep.subr.mxu0 0.0
      %460 = vmatpush1.msra.mxu0 0.0
      %461 = vmatprep.subr.mxu0 0.0
      %462 = vmatpush1.msra.mxu0 0.0
      %463 = vmatprep.subr.mxu0 0.0
      %464 = vmatpush1.msra.mxu0 0.0
      %465 = vmatprep.subr.mxu0 0.0
      %466 = vmatpush1.msra.mxu0 0.0
      %467 = vmatprep.subr.mxu0 0.0
      %468 = vmatpush1.msra.mxu0 0.0
      %469 = vmatprep.subr.mxu0 0.0
      %470 = vmatpush1.msra.mxu0 0.0
      %471 = vmatprep.subr.mxu0 0.0
      %472 = vmatpush1.msra.mxu0 0.0
      %473 = vmatprep.subr.mxu0 0.0
      %474 = vmatpush1.msra.mxu0 0.0
      %475 = vmatprep.subr.mxu0 0.0
      %476 = vmatpush1.msra.mxu0 0.0
      %477 = vmatprep.subr.mxu0 0.0
      %478 = vmatpush1.msra.mxu0 0.0
      %479 = vmatprep.subr.mxu0 0.0
      %480 = vmatpush1.msra.mxu0 0.0
      %481 = vmatprep.subr.mxu0 0.0
      %482 = vmatpush1.msra.mxu0 0.0
      %483 = vmatprep.subr.mxu0 0.0
      %484 = vmatpush1.msra.mxu0 0.0
      %485 = vmatprep.subr.mxu0 0.0
      %486 = vmatpush1.msra.mxu0 0.0
      %487 = vmatprep.mubr.f32.mxu0 0.0
      %488 = vmatmul.mubr.f32.gmra.mrb[0].mxu0 %v410
      %v489 = vpop.f32.mrb[0].mxu0
      %v490 = vadd.f32 %v391, %v489
      %v491 = vpop.f32.mrb[0].mxu0
      %492 = vmatprep.mubr.f32.mxu0 0.0
      %493 = vmatmul.mubr.f32.gmra.mrb[0].mxu0 %v413
      %v494 = vpop.f32.mrb[0].mxu0
      %v495 = vadd.f32 %v396, %v494
      %v496 = vpop.f32.mrb[0].mxu0
      %497 = vmatprep.mubr.f32.mxu0 0.0
      %498 = vmatmul.mubr.f32.gmra.mrb[0].mxu0 %v416
      %v499 = vpop.f32.mrb[0].mxu0
      %v500 = vadd.f32 %v401, %v499
      %v501 = vpop.f32.mrb[0].mxu0
      %502 = vmatprep.mubr.f32.mxu0 0.0
      %503 = vmatmul.mubr.f32.gmra.mrb[0].mxu0 %v419
      %v504 = vpop.f32.mrb[0].mxu0
      %v505 = vadd.f32 %v406, %v504
      %v506 = vpop.f32.mrb[0].mxu0
      %507 = vdwg.mxu0
      %v508 = vld [vmem:[%s3] sm:$0xff]
      %v509 = vld [vmem:[%s3 + $0x8] sm:$0xff]
      %v510 = vld [vmem:[%s3 + $0x10] sm:$0xff]
      %v511 = vld [vmem:[%s3 + $0x18] sm:$0xff]
      %513 = vset.pattern.permute.xlu0 0
      %514 = vperm.xlu0 %513, %v508
      %v515 = vpop.permute.xlu0 %514
      %518 = vset.pattern.permute.xlu0 0
      %519 = vperm.xlu0 %518, %v509
      %v520 = vpop.permute.xlu0 %519
      %523 = vset.pattern.permute.xlu0 0
      %524 = vperm.xlu0 %523, %v510
      %v525 = vpop.permute.xlu0 %524
      %528 = vset.pattern.permute.xlu0 0
      %529 = vperm.xlu0 %528, %v511
      %v530 = vpop.permute.xlu0 %529
      %v532 = vadd.f32 %v490, %v515
      %v533 = vadd.f32 %v495, %v520
      %v534 = vadd.f32 %v500, %v525
      %v535 = vadd.f32 %v505, %v530
      %v536 = vtanh.pop %v532
      %v537 = vtanh.pop %v533
      %v538 = vtanh.pop %v534
      %v539 = vtanh.pop %v535
      %v540 = vld [vmem:[%s4] sm:$0xff]
      %v541 = vld [vmem:[%s4 + $0x8] sm:$0xff]
      %v542 = vld [vmem:[%s4 + $0x10] sm:$0xff]
      %v543 = vld [vmem:[%s4 + $0x18] sm:$0xff]
      %545 = vset.pattern.permute.xlu0 0
      %546 = vperm.xlu0 %545, %v540
      %v547 = vpop.permute.xlu0 %546
      %550 = vset.pattern.permute.xlu0 0
      %551 = vperm.xlu0 %550, %v541
      %v552 = vpop.permute.xlu0 %551
      %555 = vset.pattern.permute.xlu0 0
      %556 = vperm.xlu0 %555, %v542
      %v557 = vpop.permute.xlu0 %556
      %560 = vset.pattern.permute.xlu0 0
      %561 = vperm.xlu0 %560, %v543
      %v562 = vpop.permute.xlu0 %561
      %v564 = vmul.f32 %v547, %v536
      %v565 = vmul.f32 %v552, %v537
      %v566 = vmul.f32 %v557, %v538
      %v567 = vmul.f32 %v562, %v539
      %v568 = vld [vmem:[%s5] sm:$0xff]
      %v569 = vld [vmem:[%s5 + $0x8] sm:$0xff]
      %v570 = vld [vmem:[%s5 + $0x10] sm:$0xff]
      %v571 = vld [vmem:[%s5 + $0x18] sm:$0xff]
      %573 = vset.pattern.permute.xlu0 0
      %574 = vperm.xlu0 %573, %v568
      %v575 = vpop.permute.xlu0 %574
      %578 = vset.pattern.permute.xlu0 0
      %579 = vperm.xlu0 %578, %v569
      %v580 = vpop.permute.xlu0 %579
      %583 = vset.pattern.permute.xlu0 0
      %584 = vperm.xlu0 %583, %v570
      %v585 = vpop.permute.xlu0 %584
      %588 = vset.pattern.permute.xlu0 0
      %589 = vperm.xlu0 %588, %v571
      %v590 = vpop.permute.xlu0 %589
      %v592 = vadd.f32 %v564, %v575
      %v593 = vadd.f32 %v565, %v580
      %v594 = vadd.f32 %v566, %v585
      %v595 = vadd.f32 %v567, %v590
      %vm596 = vcmask 130048
      %597 = vst.msk [vmem:[%s279] sm:$0xff] %vm596, %v592
      %598 = vst.msk [vmem:[%s279 + $0x8] sm:$0xff] %vm596, %v593
      %599 = vst.msk [vmem:[%s279 + $0x10] sm:$0xff] %vm596, %v594
      %600 = vst.msk [vmem:[%s279 + $0x18] sm:$0xff] %vm596, %v595
      %p601 = scmp.lt.s32.totalorder %s21, 1
      %s602 = scalar_select %p601, %s21, 1
      %p603 = scmp.lt.s32.totalorder %s22, 0
      %s604 = scalar_select %p603, %s22, 0
      %s605 = smul.addr %s602, 4
      %s606 = sadd.s32 %s604, %s605
      %s607 = smul.addr %s606, 8
      %s608 = scalar_lea.vmem %s6, %s607
      // Predicated region
      $region49: #{conv_layer_forward.1} parent=43 // pred_check
        %p609 = pneg %p182
      $region50: #{conv_layer_forward.1} parent=43 // pred_check_branch
        %611 = sbr.rel (%p609) target = $region52
      $region51: #{conv_layer_forward.1} parent=43 // pred_region
        _
      $region52: #{conv_layer_forward.1} parent=43 // pred_fallthru
        _
    $region44: #{conv_layer_forward.1} parent=5 // pred_fallthru
      _
    %p612 = scmp.le.s32.totalorder 2, %s12
    // Predicated region
    $region53: #{conv_layer_forward.1} parent=5 // pred_check
      %p613 = pneg %p612
    $region54: #{conv_layer_forward.1} parent=5 // pred_check_branch
      %615 = sbr.rel (%p613) target = $region56
    $region55: #{conv_layer_forward.1} parent=5 // pred_region
      %s616 = ssub.s32 %s12, 2
      // Predicated region
      $region57: #{conv_layer_forward.1} parent=55 // pred_check
        %p617 = pneg %p188
      $region58: #{conv_layer_forward.1} parent=55 // pred_check_branch
        %619 = sbr.rel (%p617) target = $region60
      $region59: #{conv_layer_forward.1} parent=55 // pred_region
        %p620 = scmp.lt.s32.totalorder %s23, 1
        %s621 = scalar_select %p620, %s23, 1
        %p622 = scmp.lt.s32.totalorder %s24, 0
        %s623 = scalar_select %p622, %s24, 0
        %s624 = smul.addr %s621, 4
        %s625 = sadd.s32 %s623, %s624
        %s626 = smul.addr %s625, 8
        %s627 = scalar_lea.vmem %s6, %s626
      $region60: #{conv_layer_forward.1} parent=55 // pred_fallthru
        _
    $region56: #{conv_layer_forward.1} parent=5 // pred_fallthru
      _
  $region6: #{conv_layer_forward.1} parent=0 // loop_footer
    %s16 = sadd.s32 1, %s12
  $region7: #{conv_layer_forward.1} parent=0 // loop_footer_branch
    %11 = sbr.rel target = $region3
  $region8: #{conv_layer_forward.1} parent=0 // loop_exit
    _

// kernel: conv_layer_forward.1
$region0: #{conv_layer_forward.1}
  #allocation0 [shape = 'u32[]', space=smem, size = 0x4, offset = 0x4, fixed_abs, tag = 'smem constant byte address 0x4 - core index']
  #allocation1 [shape = 'u32[144,128]{1,0:T(1,128)}', space=vmem, size = 0x12000, scoped, tag = 'internal scratch']
  #allocation2 [shape = 'f32[4,1]{1,0:T(4,128)}', space=vmem, size = 0x800, scoped, tag = 'scratch operand']
  %s0 = inlined_call_operand.vmem [shape: f32[2,4,16], index: 0, kind: input, shape index: {}]
  %s1 = inlined_call_operand.vmem [shape: f32[32,4], index: 1, kind: input, shape index: {}]
  %s2 = inlined_call_operand.vmem [shape: f32[32,4], index: 2, kind: input, shape index: {}]
  %s3 = inlined_call_operand.vmem [shape: f32[32,1], index: 3, kind: input, shape index: {}]
  %s4 = inlined_call_operand.vmem [shape: f32[32,1], index: 4, kind: input, shape index: {}]
  %s5 = inlined_call_operand.vmem [shape: f32[32,1], index: 5, kind: input, shape index: {}]
  %s6 = inlined_call_operand.vmem [shape: f32[2,32,16], index: 6, kind: output, shape index: {}]
  %s7 = sld [smem:[#allocation0]]
  $region61: #{conv_layer_forward.1} parent=0
    _
  %s9 = ssub.s32 1, %s7
  %s10 = scalar_select 0, %s9, %s7
  loop: start=0, step=1, limit=4
  $region2: #{conv_layer_forward.1} parent=0 // loop_pre_header
    _
  $region3: #{conv_layer_forward.1} parent=0 // loop_header
    %s12 = sphi 0, %s16
    %p13 = scmp.ge.s32.totalorder %s12, 4
    %s19 = sphi 0, %s31
    %s20 = sphi 0, %s27
    %s21 = sphi 0, %s19
    %s22 = sphi 0, %s20
    %s23 = sphi 0, %s21
    %s24 = sphi 0, %s22
    %s36 = sphi 0, %s38
    %s39 = sphi 0, %s36
    %s40 = sphi 0, %s39
    %s56 = sphi 0, %s40
    %s60 = sphi 0, %s60
    %s62 = sphi 0, %s60
    %s63 = sphi 0, %s62
    %s77 = sphi 0, %s63
    %s81 = sphi 0, %s81
    %s83 = sphi 0, %s81
    %s84 = sphi 0, %s83
    %s98 = sphi 0, %s84
    %s102 = sphi 0, %s102
    %s104 = sphi 0, %s102
    %s105 = sphi 0, %s104
    %s119 = sphi 0, %s105
    %s123 = sphi 0, %s123
    %s125 = sphi 0, %s123
    %s126 = sphi 0, %s125
    %s140 = sphi 0, %s126
    %s144 = sphi 0, %s144
    %s146 = sphi 0, %s144
    %s147 = sphi 0, %s146
    %s161 = sphi 0, %s147
    %s169 = sphi 0, %s171
    %s172 = sphi 0, %s169
    %s173 = sphi 0, %s172
    %s189 = sphi 0, %s173
  $region4: #{conv_layer_forward.1} parent=0 // loop_header_branch
    %15 = sbr.rel (%p13) target = $region8
  $region5: #{conv_layer_forward.1} parent=0 // loop_body
    %s17 = ssub.s32 %s12, 1
    %s18 = ssub.s32 %s12, 2
    %s25 = sadd.s32 1, %s20
    %p26 = scmp.ge.s32.totalorder %s25, 1
    %s27 = scalar_select %p26, 0, %s25
    %s28 = sadd.s32 1, %s19
    %s29 = scalar_select %p26, %s28, %s19
    %p30 = scmp.ge.s32.totalorder %s29, 2
    %s31 = scalar_select %p30, 0, %s29
    %s32 = ssub.s32 %s19, %s31
    %s33 = ssub.s32 %s20, %s27
    %s34 = sor.u32 %s32, %s33
    %p35 = scmp.eq.s32.totalorder %s34, 0
    %s37 = sadd.s32 %s36, 1
    %s38 = scalar_select %p35, %s36, %s37
    %p41 = pneg %p35
    %p42 = scmp.eq.s32.totalorder %s12, 1
    %p43 = por %p41, %p42
    %p44 = scmp.ne.s32.totalorder %s36, %s39
    %p45 = scmp.eq.s32.totalorder %s12, 0
    %p46 = por %p44, %p45
    %p47 = scmp.ne.s32.totalorder %s36, %s39
    %p48 = scmp.eq.s32.totalorder %s17, 1
    %p49 = por %p47, %p48
    %p50 = scmp.ne.s32.totalorder %s39, %s40
    %p51 = scmp.eq.s32.totalorder %s17, 0
    %p52 = por %p50, %p51
    %p53 = scmp.ne.s32.totalorder %s39, %s40
    %p54 = scmp.eq.s32.totalorder %s18, 1
    %p55 = por %p53, %p54
    %p57 = scmp.ne.s32.totalorder %s40, %s56
    %p58 = scmp.eq.s32.totalorder %s18, 0
    %p59 = por %p57, %p58
    %s61 = sadd.s32 %s60, 1
    %p64 = scmp.eq.s32.totalorder %s12, 1
    %p65 = scmp.ne.s32.totalorder %s60, %s62
    %p66 = scmp.eq.s32.totalorder %s12, 0
    %p67 = por %p65, %p66
    %p68 = scmp.ne.s32.totalorder %s60, %s62
    %p69 = scmp.eq.s32.totalorder %s17, 1
    %p70 = por %p68, %p69
    %p71 = scmp.ne.s32.totalorder %s62, %s63
    %p72 = scmp.eq.s32.totalorder %s17, 0
    %p73 = por %p71, %p72
    %p74 = scmp.ne.s32.totalorder %s62, %s63
    %p75 = scmp.eq.s32.totalorder %s18, 1
    %p76 = por %p74, %p75
    %p78 = scmp.ne.s32.totalorder %s63, %s77
    %p79 = scmp.eq.s32.totalorder %s18, 0
    %p80 = por %p78, %p79
    %s82 = sadd.s32 %s81, 1
    %p85 = scmp.eq.s32.totalorder %s12, 1
    %p86 = scmp.ne.s32.totalorder %s81, %s83
    %p87 = scmp.eq.s32.totalorder %s12, 0
    %p88 = por %p86, %p87
    %p89 = scmp.ne.s32.totalorder %s81, %s83
    %p90 = scmp.eq.s32.totalorder %s17, 1
    %p91 = por %p89, %p90
    %p92 = scmp.ne.s32.totalorder %s83, %s84
    %p93 = scmp.eq.s32.totalorder %s17, 0
    %p94 = por %p92, %p93
    %p95 = scmp.ne.s32.totalorder %s83, %s84
    %p96 = scmp.eq.s32.totalorder %s18, 1
    %p97 = por %p95, %p96
    %p99 = scmp.ne.s32.totalorder %s84, %s98
    %p100 = scmp.eq.s32.totalorder %s18, 0
    %p101 = por %p99, %p100
    %s103 = sadd.s32 %s102, 1
    %p106 = scmp.eq.s32.totalorder %s12, 1
    %p107 = scmp.ne.s32.totalorder %s102, %s104
    %p108 = scmp.eq.s32.totalorder %s12, 0
    %p109 = por %p107, %p108
    %p110 = scmp.ne.s32.totalorder %s102, %s104
    %p111 = scmp.eq.s32.totalorder %s17, 1
    %p112 = por %p110, %p111
    %p113 = scmp.ne.s32.totalorder %s104, %s105
    %p114 = scmp.eq.s32.totalorder %s17, 0
    %p115 = por %p113, %p114
    %p116 = scmp.ne.s32.totalorder %s104, %s105
    %p117 = scmp.eq.s32.totalorder %s18, 1
    %p118 = por %p116, %p117
    %p120 = scmp.ne.s32.totalorder %s105, %s119
    %p121 = scmp.eq.s32.totalorder %s18, 0
    %p122 = por %p120, %p121
    %s124 = sadd.s32 %s123, 1
    %p127 = scmp.eq.s32.totalorder %s12, 1
    %p128 = scmp.ne.s32.totalorder %s123, %s125
    %p129 = scmp.eq.s32.totalorder %s12, 0
    %p130 = por %p128, %p129
    %p131 = scmp.ne.s32.totalorder %s123, %s125
    %p132 = scmp.eq.s32.totalorder %s17, 1
    %p133 = por %p131, %p132
    %p134 = scmp.ne.s32.totalorder %s125, %s126
    %p135 = scmp.eq.s32.totalorder %s17, 0
    %p136 = por %p134, %p135
    %p137 = scmp.ne.s32.totalorder %s125, %s126
    %p138 = scmp.eq.s32.totalorder %s18, 1
    %p139 = por %p137, %p138
    %p141 = scmp.ne.s32.totalorder %s126, %s140
    %p142 = scmp.eq.s32.totalorder %s18, 0
    %p143 = por %p141, %p142
    %s145 = sadd.s32 %s144, 1
    %p148 = scmp.eq.s32.totalorder %s12, 1
    %p149 = scmp.ne.s32.totalorder %s144, %s146
    %p150 = scmp.eq.s32.totalorder %s12, 0
    %p151 = por %p149, %p150
    %p152 = scmp.ne.s32.totalorder %s144, %s146
    %p153 = scmp.eq.s32.totalorder %s17, 1
    %p154 = por %p152, %p153
    %p155 = scmp.ne.s32.totalorder %s146, %s147
    %p156 = scmp.eq.s32.totalorder %s17, 0
    %p157 = por %p155, %p156
    %p158 = scmp.ne.s32.totalorder %s146, %s147
    %p159 = scmp.eq.s32.totalorder %s18, 1
    %p160 = por %p158, %p159
    %p162 = scmp.ne.s32.totalorder %s147, %s161
    %p163 = scmp.eq.s32.totalorder %s18, 0
    %p164 = por %p162, %p163
    %s165 = ssub.s32 %s19, %s31
    %s166 = ssub.s32 %s20, %s27
    %s167 = sor.u32 %s165, %s166
    %p168 = scmp.eq.s32.totalorder %s167, 0
    %s170 = sadd.s32 %s169, 1
    %s171 = scalar_select %p168, %s169, %s170
    %p174 = pneg %p168
    %p175 = scmp.eq.s32.totalorder %s12, 1
    %p176 = por %p174, %p175
    %p177 = scmp.ne.s32.totalorder %s169, %s172
    %p178 = scmp.eq.s32.totalorder %s12, 0
    %p179 = por %p177, %p178
    %p180 = scmp.ne.s32.totalorder %s169, %s172
    %p181 = scmp.eq.s32.totalorder %s17, 1
    %p182 = por %p180, %p181
    %p183 = scmp.ne.s32.totalorder %s172, %s173
    %p184 = scmp.eq.s32.totalorder %s17, 0
    %p185 = por %p183, %p184
    %p186 = scmp.ne.s32.totalorder %s172, %s173
    %p187 = scmp.eq.s32.totalorder %s18, 1
    %p188 = por %p186, %p187
    %p190 = scmp.ne.s32.totalorder %s173, %s189
    %p191 = scmp.eq.s32.totalorder %s18, 0
    %p192 = por %p190, %p191
    %p193 = scmp.le.s32.totalorder 1, %s12
    %p194 = scmp.lt.s32.totalorder %s12, 3
    %p195 = pnand %p193, %p194
    %p196 = pneg %p195
    // Predicated region
    $region9: #{conv_layer_forward.1} parent=5 // pred_check
      _
    $region10: #{conv_layer_forward.1} parent=5 // pred_check_branch
      %198 = sbr.rel (%p195) target = $region12
    $region11: #{conv_layer_forward.1} parent=5 // pred_region
      %s199 = ssub.s32 %s12, 1
      // Predicated region
      $region13: #{conv_layer_forward.1} parent=11 // pred_check
        %p200 = pneg %p73
      $region14: #{conv_layer_forward.1} parent=11 // pred_check_branch
        %202 = sbr.rel (%p200) target = $region16
      $region15: #{conv_layer_forward.1} parent=11 // pred_region
        _
      $region16: #{conv_layer_forward.1} parent=11 // pred_fallthru
        _
      // Predicated region
      $region17: #{conv_layer_forward.1} parent=11 // pred_check
        %p203 = pneg %p94
      $region18: #{conv_layer_forward.1} parent=11 // pred_check_branch
        %205 = sbr.rel (%p203) target = $region20
      $region19: #{conv_layer_forward.1} parent=11 // pred_region
        _
      $region20: #{conv_layer_forward.1} parent=11 // pred_fallthru
        _
      // Predicated region
      $region21: #{conv_layer_forward.1} parent=11 // pred_check
        %p206 = pneg %p115
      $region22: #{conv_layer_forward.1} parent=11 // pred_check_branch
        %208 = sbr.rel (%p206) target = $region24
      $region23: #{conv_layer_forward.1} parent=11 // pred_region
        _
      $region24: #{conv_layer_forward.1} parent=11 // pred_fallthru
        _
      // Predicated region
      $region25: #{conv_layer_forward.1} parent=11 // pred_check
        %p209 = pneg %p136
      $region26: #{conv_layer_forward.1} parent=11 // pred_check_branch
        %211 = sbr.rel (%p209) target = $region28
      $region27: #{conv_layer_forward.1} parent=11 // pred_region
        _
      $region28: #{conv_layer_forward.1} parent=11 // pred_fallthru
        _
      // Predicated region
      $region29: #{conv_layer_forward.1} parent=11 // pred_check
        %p212 = pneg %p157
      $region30: #{conv_layer_forward.1} parent=11 // pred_check_branch
        %214 = sbr.rel (%p212) target = $region32
      $region31: #{conv_layer_forward.1} parent=11 // pred_region
        _
      $region32: #{conv_layer_forward.1} parent=11 // pred_fallthru
        _
    $region12: #{conv_layer_forward.1} parent=5 // pred_fallthru
      _
    %p215 = scmp.lt.s32.totalorder %s12, 2
    // Predicated region
    $region33: #{conv_layer_forward.1} parent=5 // pred_check
      %p216 = pneg %p215
    $region34: #{conv_layer_forward.1} parent=5 // pred_check_branch
      %218 = sbr.rel (%p216) target = $region36
    $region35: #{conv_layer_forward.1} parent=5 // pred_region
      // Predicated region
      $region37: #{conv_layer_forward.1} parent=35 // pred_check
        %p219 = pneg %p46
      $region38: #{conv_layer_forward.1} parent=35 // pred_check_branch
        %221 = sbr.rel (%p219) target = $region40
      $region39: #{conv_layer_forward.1} parent=35 // pred_region
        %p222 = scmp.lt.s32.totalorder %s19, 1
        %s223 = scalar_select %p222, %s19, 1
        %p224 = scmp.lt.s32.totalorder %s20, 0
        %s225 = scalar_select %p224, %s20, 0
        %s226 = sadd.s32 %s225, %s223
        %s227 = smul.addr %s226, 4
        %s228 = scalar_lea.vmem %s0, %s227
      $region40: #{conv_layer_forward.1} parent=35 // pred_fallthru
        _
    $region36: #{conv_layer_forward.1} parent=5 // pred_fallthru
      _
    %p229 = scmp.le.s32.totalorder 1, %s12
    %p230 = scmp.lt.s32.totalorder %s12, 3
    %p231 = pnand %p229, %p230
    %p232 = pneg %p231
    // Predicated region
    $region41: #{conv_layer_forward.1} parent=5 // pred_check
      _
    $region42: #{conv_layer_forward.1} parent=5 // pred_check_branch
      %234 = sbr.rel (%p231) target = $region44
    $region43: #{conv_layer_forward.1} parent=5 // pred_region
      %s235 = ssub.s32 %s12, 1
      %p236 = scmp.lt.s32.totalorder %s21, 1
      %s237 = scalar_select %p236, %s21, 1
      %p238 = scmp.lt.s32.totalorder %s22, 0
      %s239 = scalar_select %p238, %s22, 0
      %s240 = sadd.s32 %s239, %s237
      %s241 = smul.addr %s240, 4
      %s242 = scalar_lea.vmem %s0, %s241
      %p243 = pneg %p52
      %p244 = pneg %p49
      %p245 = pneg %p73
      %p246 = pneg %p70
      %p247 = pneg %p94
      %p248 = pneg %p91
      %p249 = pneg %p115
      %p250 = pneg %p112
      %p251 = pneg %p136
      %p252 = pneg %p133
      %p253 = pneg %p157
      %p254 = pneg %p154
      %p255 = pneg %p185
      %p256 = pneg %p182
      %p257 = scmp.lt.s32.totalorder %s21, 1
      %s258 = scalar_select %p257, %s21, 1
      %p259 = scmp.lt.s32.totalorder %s22, 0
      %s260 = scalar_select %p259, %s22, 0
      %s261 = smul.addr %s258, 4
      %s262 = sadd.s32 %s260, %s261
      %s263 = smul.addr %s262, 8
      %s264 = scalar_lea.vmem %s6, %s263
      %p265 = scmp.lt.s32.totalorder %s21, 1
      %s266 = scalar_select %p265, %s21, 1
      %p267 = scmp.lt.s32.totalorder %s22, 0
      %s268 = scalar_select %p267, %s22, 0
      %s269 = sadd.s32 %s268, %s266
      %s270 = smul.addr %s269, 4
      %s271 = scalar_lea.vmem %s0, %s270
      %p272 = scmp.lt.s32.totalorder %s21, 1
      %s273 = scalar_select %p272, %s21, 1
      %p274 = scmp.lt.s32.totalorder %s22, 0
      %s275 = scalar_select %p274, %s22, 0
      %s276 = smul.addr %s273, 4
      %s277 = sadd.s32 %s275, %s276
      %s278 = smul.addr %s277, 8
      %s279 = scalar_lea.vmem %s6, %s278
      %p280 = scmp.eq.s32.totalorder %s22, 0
      // Predicated region
      $region45: #{conv_layer_forward.1} parent=43 // pred_check
        %p281 = pneg %p280
      $region46: #{conv_layer_forward.1} parent=43 // pred_check_branch
        %283 = sbr.rel (%p281) target = $region48
      $region47: #{conv_layer_forward.1} parent=43 // pred_region
        %vm284 = vcmask 3072
        %285 = vst.msk [vmem:[#allocation2] sm:$0xf] %vm284, 0.0
      $region48: #{conv_layer_forward.1} parent=43 // pred_fallthru
        _
      %v286 = vld [vmem:[%s271] sm:$0xf]
      %v287 = vld [vmem:[#allocation2] sm:$0xf]
      %289 = vrot.lane.b32.xlu0 %v286, 1
      %v290 = vpop.permute.xlu0 %289
      %vm292 = vcmask 7168
      %v293 = vsel %vm292, %v287, %v290
      %294 = vrot.lane.b32.xlu0 %v286, 113
      %v295 = vpop.permute.xlu0 %294
      %vm297 = vcmask 3072
      %298 = vst.msk [vmem:[#allocation2] sm:$0xf] %vm297, %v295
      %v299 = vld [vmem:[%s1] sm:$0xff]
      %v300 = vld [vmem:[%s1 + $0x8] sm:$0xff]
      %v301 = vld [vmem:[%s1 + $0x10] sm:$0xff]
      %v302 = vld [vmem:[%s1 + $0x18] sm:$0xff]
      %v303 = vld [vmem:[%s2] sm:$0xff]
      %v304 = vld [vmem:[%s2 + $0x8] sm:$0xff]
      %v305 = vld [vmem:[%s2 + $0x10] sm:$0xff]
      %v306 = vld [vmem:[%s2 + $0x18] sm:$0xff]
      %vm307 = vcmask 31744
      %v309 = vsel %vm307, %v303, 0
      %v312 = vsel %vm307, %v304, 0
      %v315 = vsel %vm307, %v305, 0
      %v318 = vsel %vm307, %v306, 0
      %vm320 = vcmask 1043456
      %v322 = vsel %vm320, %v293, 0
      %324 = vmatprep.subr.mxu0 0.0
      %325 = vmatpush1.msra.mxu0 %v322
      %326 = vmatprep.subr.mxu0 0.0
      %327 = vmatpush1.msra.mxu0 0.0
      %328 = vmatprep.subr.mxu0 0.0
      %329 = vmatpush1.msra.mxu0 0.0
      %330 = vmatprep.subr.mxu0 0.0
      %331 = vmatpush1.msra.mxu0 0.0
      %332 = vmatprep.subr.mxu0 0.0
      %333 = vmatpush1.msra.mxu0 0.0
      %334 = vmatprep.subr.mxu0 0.0
      %335 = vmatpush1.msra.mxu0 0.0
      %336 = vmatprep.subr.mxu0 0.0
      %337 = vmatpush1.msra.mxu0 0.0
      %338 = vmatprep.subr.mxu0 0.0
      %339 = vmatpush1.msra.mxu0 0.0
      %340 = vmatprep.subr.mxu0 0.0
      %341 = vmatpush1.msra.mxu0 0.0
      %342 = vmatprep.subr.mxu0 0.0
      %343 = vmatpush1.msra.mxu0 0.0
      %344 = vmatprep.subr.mxu0 0.0
      %345 = vmatpush1.msra.mxu0 0.0
      %346 = vmatprep.subr.mxu0 0.0
      %347 = vmatpush1.msra.mxu0 0.0
      %348 = vmatprep.subr.mxu0 0.0
      %349 = vmatpush1.msra.mxu0 0.0
      %350 = vmatprep.subr.mxu0 0.0
      %351 = vmatpush1.msra.mxu0 0.0
      %352 = vmatprep.subr.mxu0 0.0
      %353 = vmatpush1.msra.mxu0 0.0
      %354 = vmatprep.subr.mxu0 0.0
      %355 = vmatpush1.msra.mxu0 0.0
      %356 = vmatprep.subr.mxu0 0.0
      %357 = vmatpush1.msra.mxu0 0.0
      %358 = vmatprep.subr.mxu0 0.0
      %359 = vmatpush1.msra.mxu0 0.0
      %360 = vmatprep.subr.mxu0 0.0
      %361 = vmatpush1.msra.mxu0 0.0
      %362 = vmatprep.subr.mxu0 0.0
      %363 = vmatpush1.msra.mxu0 0.0
      %364 = vmatprep.subr.mxu0 0.0
      %365 = vmatpush1.msra.mxu0 0.0
      %366 = vmatprep.subr.mxu0 0.0
      %367 = vmatpush1.msra.mxu0 0.0
      %368 = vmatprep.subr.mxu0 0.0
      %369 = vmatpush1.msra.mxu0 0.0
      %370 = vmatprep.subr.mxu0 0.0
      %371 = vmatpush1.msra.mxu0 0.0
      %372 = vmatprep.subr.mxu0 0.0
      %373 = vmatpush1.msra.mxu0 0.0
      %374 = vmatprep.subr.mxu0 0.0
      %375 = vmatpush1.msra.mxu0 0.0
      %376 = vmatprep.subr.mxu0 0.0
      %377 = vmatpush1.msra.mxu0 0.0
      %378 = vmatprep.subr.mxu0 0.0
      %379 = vmatpush1.msra.mxu0 0.0
      %380 = vmatprep.subr.mxu0 0.0
      %381 = vmatpush1.msra.mxu0 0.0
      %382 = vmatprep.subr.mxu0 0.0
      %383 = vmatpush1.msra.mxu0 0.0
      %384 = vmatprep.subr.mxu0 0.0
      %385 = vmatpush1.msra.mxu0 0.0
      %386 = vmatprep.subr.mxu0 0.0
      %387 = vmatpush1.msra.mxu0 0.0
      %388 = vmatprep.mubr.f32.mxu0 0.0
      %389 = vmatmul.mubr.f32.gmra.mrb[0].mxu0 %v309
      %v390 = vpop.f32.mrb[0].mxu0
      %v391 = vadd.f32 0.0, %v390
      %v392 = vpop.f32.mrb[0].mxu0
      %393 = vmatprep.mubr.f32.mxu0 0.0
      %394 = vmatmul.mubr.f32.gmra.mrb[0].mxu0 %v312
      %v395 = vpop.f32.mrb[0].mxu0
      %v396 = vadd.f32 0.0, %v395
      %v397 = vpop.f32.mrb[0].mxu0
      %398 = vmatprep.mubr.f32.mxu0 0.0
      %399 = vmatmul.mubr.f32.gmra.mrb[0].mxu0 %v315
      %v400 = vpop.f32.mrb[0].mxu0
      %v401 = vadd.f32 0.0, %v400
      %v402 = vpop.f32.mrb[0].mxu0
      %403 = vmatprep.mubr.f32.mxu0 0.0
      %404 = vmatmul.mubr.f32.gmra.mrb[0].mxu0 %v318
      %v405 = vpop.f32.mrb[0].mxu0
      %v406 = vadd.f32 0.0, %v405
      %v407 = vpop.f32.mrb[0].mxu0
      %408 = vdwg.mxu0
      %v410 = vsel %vm307, %v299, 0
      %v413 = vsel %vm307, %v300, 0
      %v416 = vsel %vm307, %v301, 0
      %v419 = vsel %vm307, %v302, 0
      %v421 = vsel %vm320, %v286, 0
      %423 = vmatprep.subr.mxu0 0.0
      %424 = vmatpush1.msra.mxu0 %v421
      %425 = vmatprep.subr.mxu0 0.0
      %426 = vmatpush1.msra.mxu0 0.0
      %427 = vmatprep.subr.mxu0 0.0
      %428 = vmatpush1.msra.mxu0 0.0
      %429 = vmatprep.subr.mxu0 0.0
      %430 = vmatpush1.msra.mxu0 0.0
      %431 = vmatprep.subr.mxu0 0.0
      %432 = vmatpush1.msra.mxu0 0.0
      %433 = vmatprep.subr.mxu0 0.0
      %434 = vmatpush1.msra.mxu0 0.0
      %435 = vmatprep.subr.mxu0 0.0
      %436 = vmatpush1.msra.mxu0 0.0
      %437 = vmatprep.subr.mxu0 0.0
      %438 = vmatpush1.msra.mxu0 0.0
      %439 = vmatprep.subr.mxu0 0.0
      %440 = vmatpush1.msra.mxu0 0.0
      %441 = vmatprep.subr.mxu0 0.0
      %442 = vmatpush1.msra.mxu0 0.0
      %443 = vmatprep.subr.mxu0 0.0
      %444 = vmatpush1.msra.mxu0 0.0
      %445 = vmatprep.subr.mxu0 0.0
      %446 = vmatpush1.msra.mxu0 0.0
      %447 = vmatprep.subr.mxu0 0.0
      %448 = vmatpush1.msra.mxu0 0.0
      %449 = vmatprep.subr.mxu0 0.0
      %450 = vmatpush1.msra.mxu0 0.0
      %451 = vmatprep.subr.mxu0 0.0
      %452 = vmatpush1.msra.mxu0 0.0
      %453 = vmatprep.subr.mxu0 0.0
      %454 = vmatpush1.msra.mxu0 0.0
      %455 = vmatprep.subr.mxu0 0.0
      %456 = vmatpush1.msra.mxu0 0.0
      %457 = vmatprep.subr.mxu0 0.0
      %458 = vmatpush1.msra.mxu0 0.0
      %459 = vmatprep.subr.mxu0 0.0
      %460 = vmatpush1.msra.mxu0 0.0
      %461 = vmatprep.subr.mxu0 0.0
      %462 = vmatpush1.msra.mxu0 0.0
      %463 = vmatprep.subr.mxu0 0.0
      %464 = vmatpush1.msra.mxu0 0.0
      %465 = vmatprep.subr.mxu0 0.0
      %466 = vmatpush1.msra.mxu0 0.0
      %467 = vmatprep.subr.mxu0 0.0
      %468 = vmatpush1.msra.mxu0 0.0
      %469 = vmatprep.subr.mxu0 0.0
      %470 = vmatpush1.msra.mxu0 0.0
      %471 = vmatprep.subr.mxu0 0.0
      %472 = vmatpush1.msra.mxu0 0.0
      %473 = vmatprep.subr.mxu0 0.0
      %474 = vmatpush1.msra.mxu0 0.0
      %475 = vmatprep.subr.mxu0 0.0
      %476 = vmatpush1.msra.mxu0 0.0
      %477 = vmatprep.subr.mxu0 0.0
      %478 = vmatpush1.msra.mxu0 0.0
      %479 = vmatprep.subr.mxu0 0.0
      %480 = vmatpush1.msra.mxu0 0.0
      %481 = vmatprep.subr.mxu0 0.0
      %482 = vmatpush1.msra.mxu0 0.0
      %483 = vmatprep.subr.mxu0 0.0
      %484 = vmatpush1.msra.mxu0 0.0
      %485 = vmatprep.subr.mxu0 0.0
      %486 = vmatpush1.msra.mxu0 0.0
      %487 = vmatprep.mubr.f32.mxu0 0.0
      %488 = vmatmul.mubr.f32.gmra.mrb[0].mxu0 %v410
      %v489 = vpop.f32.mrb[0].mxu0
      %v490 = vadd.f32 %v391, %v489
      %v491 = vpop.f32.mrb[0].mxu0
      %492 = vmatprep.mubr.f32.mxu0 0.0
      %493 = vmatmul.mubr.f32.gmra.mrb[0].mxu0 %v413
      %v494 = vpop.f32.mrb[0].mxu0
      %v495 = vadd.f32 %v396, %v494
      %v496 = vpop.f32.mrb[0].mxu0
      %497 = vmatprep.mubr.f32.mxu0 0.0
      %498 = vmatmul.mubr.f32.gmra.mrb[0].mxu0 %v416
      %v499 = vpop.f32.mrb[0].mxu0
      %v500 = vadd.f32 %v401, %v499
      %v501 = vpop.f32.mrb[0].mxu0
      %502 = vmatprep.mubr.f32.mxu0 0.0
      %503 = vmatmul.mubr.f32.gmra.mrb[0].mxu0 %v419
      %v504 = vpop.f32.mrb[0].mxu0
      %v505 = vadd.f32 %v406, %v504
      %v506 = vpop.f32.mrb[0].mxu0
      %507 = vdwg.mxu0
      %v508 = vld [vmem:[%s3] sm:$0xff]
      %v509 = vld [vmem:[%s3 + $0x8] sm:$0xff]
      %v510 = vld [vmem:[%s3 + $0x10] sm:$0xff]
      %v511 = vld [vmem:[%s3 + $0x18] sm:$0xff]
      %513 = vset.pattern.permute.xlu0 0
      %514 = vperm.xlu0 %513, %v508
      %v515 = vpop.permute.xlu0 %514
      %518 = vset.pattern.permute.xlu0 0
      %519 = vperm.xlu0 %518, %v509
      %v520 = vpop.permute.xlu0 %519
      %523 = vset.pattern.permute.xlu0 0
      %524 = vperm.xlu0 %523, %v510
      %v525 = vpop.permute.xlu0 %524
      %528 = vset.pattern.permute.xlu0 0
      %529 = vperm.xlu0 %528, %v511
      %v530 = vpop.permute.xlu0 %529
      %v532 = vadd.f32 %v490, %v515
      %v533 = vadd.f32 %v495, %v520
      %v534 = vadd.f32 %v500, %v525
      %v535 = vadd.f32 %v505, %v530
      %v536 = vtanh.pop %v532
      %v537 = vtanh.pop %v533
      %v538 = vtanh.pop %v534
      %v539 = vtanh.pop %v535
      %v540 = vld [vmem:[%s4] sm:$0xff]
      %v541 = vld [vmem:[%s4 + $0x8] sm:$0xff]
      %v542 = vld [vmem:[%s4 + $0x10] sm:$0xff]
      %v543 = vld [vmem:[%s4 + $0x18] sm:$0xff]
      %545 = vset.pattern.permute.xlu0 0
      %546 = vperm.xlu0 %545, %v540
      %v547 = vpop.permute.xlu0 %546
      %550 = vset.pattern.permute.xlu0 0
      %551 = vperm.xlu0 %550, %v541
      %v552 = vpop.permute.xlu0 %551
      %555 = vset.pattern.permute.xlu0 0
      %556 = vperm.xlu0 %555, %v542
      %v557 = vpop.permute.xlu0 %556
      %560 = vset.pattern.permute.xlu0 0
      %561 = vperm.xlu0 %560, %v543
      %v562 = vpop.permute.xlu0 %561
      %v564 = vmul.f32 %v547, %v536
      %v565 = vmul.f32 %v552, %v537
      %v566 = vmul.f32 %v557, %v538
      %v567 = vmul.f32 %v562, %v539
      %v568 = vld [vmem:[%s5] sm:$0xff]
      %v569 = vld [vmem:[%s5 + $0x8] sm:$0xff]
      %v570 = vld [vmem:[%s5 + $0x10] sm:$0xff]
      %v571 = vld [vmem:[%s5 + $0x18] sm:$0xff]
      %573 = vset.pattern.permute.xlu0 0
      %574 = vperm.xlu0 %573, %v568
      %v575 = vpop.permute.xlu0 %574
      %578 = vset.pattern.permute.xlu0 0
      %579 = vperm.xlu0 %578, %v569
      %v580 = vpop.permute.xlu0 %579
      %583 = vset.pattern.permute.xlu0 0
      %584 = vperm.xlu0 %583, %v570
      %v585 = vpop.permute.xlu0 %584
      %588 = vset.pattern.permute.xlu0 0
      %589 = vperm.xlu0 %588, %v571
      %v590 = vpop.permute.xlu0 %589
      %v592 = vadd.f32 %v564, %v575
      %v593 = vadd.f32 %v565, %v580
      %v594 = vadd.f32 %v566, %v585
      %v595 = vadd.f32 %v567, %v590
      %vm596 = vcmask 130048
      %597 = vst.msk [vmem:[%s279] sm:$0xff] %vm596, %v592
      %598 = vst.msk [vmem:[%s279 + $0x8] sm:$0xff] %vm596, %v593
      %599 = vst.msk [vmem:[%s279 + $0x10] sm:$0xff] %vm596, %v594
      %600 = vst.msk [vmem:[%s279 + $0x18] sm:$0xff] %vm596, %v595
      %p601 = scmp.lt.s32.totalorder %s21, 1
      %s602 = scalar_select %p601, %s21, 1
      %p603 = scmp.lt.s32.totalorder %s22, 0
      %s604 = scalar_select %p603, %s22, 0
      %s605 = smul.addr %s602, 4
      %s606 = sadd.s32 %s604, %s605
      %s607 = smul.addr %s606, 8
      %s608 = scalar_lea.vmem %s6, %s607
      // Predicated region
      $region49: #{conv_layer_forward.1} parent=43 // pred_check
        %p609 = pneg %p182
      $region50: #{conv_layer_forward.1} parent=43 // pred_check_branch
        %611 = sbr.rel (%p609) target = $region52
      $region51: #{conv_layer_forward.1} parent=43 // pred_region
        _
      $region52: #{conv_layer_forward.1} parent=43 // pred_fallthru
        _
    $region44: #{conv_layer_forward.1} parent=5 // pred_fallthru
      _
    %p612 = scmp.le.s32.totalorder 2, %s12
    // Predicated region
    $region53: #{conv_layer_forward.1} parent=5 // pred_check
      %p613 = pneg %p612
    $region54: #{conv_layer_forward.1} parent=5 // pred_check_branch
      %615 = sbr.rel (%p613) target = $region56
    $region55: #{conv_layer_forward.1} parent=5 // pred_region
      %s616 = ssub.s32 %s12, 2
      // Predicated region
      $region57: #{conv_layer_forward.1} parent=55 // pred_check
        %p617 = pneg %p188
      $region58: #{conv_layer_forward.1} parent=55 // pred_check_branch
        %619 = sbr.rel (%p617) target = $region60
      $region59: #{conv_layer_forward.1} parent=55 // pred_region
        %p620 = scmp.lt.s32.totalorder %s23, 1
        %s621 = scalar_select %p620, %s23, 1
        %p622 = scmp.lt.s32.totalorder %s24, 0
        %s623 = scalar_select %p622, %s24, 0
        %s624 = smul.addr %s621, 4
        %s625 = sadd.s32 %s623, %s624
        %s626 = smul.addr %s625, 8
        %s627 = scalar_lea.vmem %s6, %s626
      $region60: #{conv_layer_forward.1} parent=55 // pred_fallthru
        _
    $region56: #{conv_layer_forward.1} parent=5 // pred_fallthru
      _
  $region6: #{conv_layer_forward.1} parent=0 // loop_footer
    %s16 = sadd.s32 1, %s12
  $region7: #{conv_layer_forward.1} parent=0 // loop_footer_branch
    %11 = sbr.rel target = $region3
  $region8: #{conv_layer_forward.1} parent=0 // loop_exit
    _

// kernel: conv_layer_forward.1
$region0: #{conv_layer_forward.1}
  #allocation0 [shape = 'u32[]', space=smem, size = 0x4, offset = 0x4, fixed_abs, tag = 'smem constant byte address 0x4 - core index']
  #allocation1 [shape = 'u32[144,128]{1,0:T(1,128)}', space=vmem, size = 0x12000, scoped, tag = 'internal scratch']
  %s0 = inlined_call_operand.vmem [shape: f32[2,4,16], index: 0, kind: input, shape index: {}]
  %s1 = inlined_call_operand.vmem [shape: f32[2,4,16], index: 1, kind: input, shape index: {}]
  %s2 = inlined_call_operand.vmem [shape: f32[32,4], index: 2, kind: input, shape index: {}]
  %s3 = inlined_call_operand.vmem [shape: f32[32,4], index: 3, kind: input, shape index: {}]
  %s4 = inlined_call_operand.vmem [shape: f32[32,1], index: 4, kind: input, shape index: {}]
  %s5 = inlined_call_operand.vmem [shape: f32[32,1], index: 5, kind: input, shape index: {}]
  %s6 = inlined_call_operand.vmem [shape: f32[32,1], index: 6, kind: input, shape index: {}]
  %s7 = inlined_call_operand.vmem [shape: f32[2,32,16], index: 7, kind: output, shape index: {}]
  %s8 = sld [smem:[#allocation0]]
  $region61: #{conv_layer_forward.1} parent=0
    _
  %s10 = ssub.s32 1, %s8
  %s11 = scalar_select 0, %s10, %s8
  loop: start=0, step=1, limit=4
  $region2: #{conv_layer_forward.1} parent=0 // loop_pre_header
    _
  $region3: #{conv_layer_forward.1} parent=0 // loop_header
    %s13 = sphi 0, %s17
    %p14 = scmp.ge.s32.totalorder %s13, 4
    %s20 = sphi 0, %s32
    %s21 = sphi 0, %s28
    %s22 = sphi 0, %s20
    %s23 = sphi 0, %s21
    %s24 = sphi 0, %s22
    %s25 = sphi 0, %s23
    %s37 = sphi 0, %s39
    %s40 = sphi 0, %s37
    %s41 = sphi 0, %s40
    %s57 = sphi 0, %s41
    %s65 = sphi 0, %s67
    %s68 = sphi 0, %s65
    %s69 = sphi 0, %s68
    %s85 = sphi 0, %s69
    %s89 = sphi 0, %s89
    %s91 = sphi 0, %s89
    %s92 = sphi 0, %s91
    %s106 = sphi 0, %s92
    %s110 = sphi 0, %s110
    %s112 = sphi 0, %s110
    %s113 = sphi 0, %s112
    %s127 = sphi 0, %s113
    %s131 = sphi 0, %s131
    %s133 = sphi 0, %s131
    %s134 = sphi 0, %s133
    %s148 = sphi 0, %s134
    %s152 = sphi 0, %s152
    %s154 = sphi 0, %s152
    %s155 = sphi 0, %s154
    %s169 = sphi 0, %s155
    %s173 = sphi 0, %s173
    %s175 = sphi 0, %s173
    %s176 = sphi 0, %s175
    %s190 = sphi 0, %s176
    %s198 = sphi 0, %s200
    %s201 = sphi 0, %s198
    %s202 = sphi 0, %s201
    %s218 = sphi 0, %s202
  $region4: #{conv_layer_forward.1} parent=0 // loop_header_branch
    %16 = sbr.rel (%p14) target = $region8
  $region5: #{conv_layer_forward.1} parent=0 // loop_body
    %s18 = ssub.s32 %s13, 1
    %s19 = ssub.s32 %s13, 2
    %s26 = sadd.s32 1, %s21
    %p27 = scmp.ge.s32.totalorder %s26, 1
    %s28 = scalar_select %p27, 0, %s26
    %s29 = sadd.s32 1, %s20
    %s30 = scalar_select %p27, %s29, %s20
    %p31 = scmp.ge.s32.totalorder %s30, 2
    %s32 = scalar_select %p31, 0, %s30
    %s33 = ssub.s32 %s20, %s32
    %s34 = ssub.s32 %s21, %s28
    %s35 = sor.u32 %s33, %s34
    %p36 = scmp.eq.s32.totalorder %s35, 0
    %s38 = sadd.s32 %s37, 1
    %s39 = scalar_select %p36, %s37, %s38
    %p42 = pneg %p36
    %p43 = scmp.eq.s32.totalorder %s13, 1
    %p44 = por %p42, %p43
    %p45 = scmp.ne.s32.totalorder %s37, %s40
    %p46 = scmp.eq.s32.totalorder %s13, 0
    %p47 = por %p45, %p46
    %p48 = scmp.ne.s32.totalorder %s37, %s40
    %p49 = scmp.eq.s32.totalorder %s18, 1
    %p50 = por %p48, %p49
    %p51 = scmp.ne.s32.totalorder %s40, %s41
    %p52 = scmp.eq.s32.totalorder %s18, 0
    %p53 = por %p51, %p52
    %p54 = scmp.ne.s32.totalorder %s40, %s41
    %p55 = scmp.eq.s32.totalorder %s19, 1
    %p56 = por %p54, %p55
    %p58 = scmp.ne.s32.totalorder %s41, %s57
    %p59 = scmp.eq.s32.totalorder %s19, 0
    %p60 = por %p58, %p59
    %s61 = ssub.s32 %s20, %s32
    %s62 = ssub.s32 %s21, %s28
    %s63 = sor.u32 %s61, %s62
    %p64 = scmp.eq.s32.totalorder %s63, 0
    %s66 = sadd.s32 %s65, 1
    %s67 = scalar_select %p64, %s65, %s66
    %p70 = pneg %p64
    %p71 = scmp.eq.s32.totalorder %s13, 1
    %p72 = por %p70, %p71
    %p73 = scmp.ne.s32.totalorder %s65, %s68
    %p74 = scmp.eq.s32.totalorder %s13, 0
    %p75 = por %p73, %p74
    %p76 = scmp.ne.s32.totalorder %s65, %s68
    %p77 = scmp.eq.s32.totalorder %s18, 1
    %p78 = por %p76, %p77
    %p79 = scmp.ne.s32.totalorder %s68, %s69
    %p80 = scmp.eq.s32.totalorder %s18, 0
    %p81 = por %p79, %p80
    %p82 = scmp.ne.s32.totalorder %s68, %s69
    %p83 = scmp.eq.s32.totalorder %s19, 1
    %p84 = por %p82, %p83
    %p86 = scmp.ne.s32.totalorder %s69, %s85
    %p87 = scmp.eq.s32.totalorder %s19, 0
    %p88 = por %p86, %p87
    %s90 = sadd.s32 %s89, 1
    %p93 = scmp.eq.s32.totalorder %s13, 1
    %p94 = scmp.ne.s32.totalorder %s89, %s91
    %p95 = scmp.eq.s32.totalorder %s13, 0
    %p96 = por %p94, %p95
    %p97 = scmp.ne.s32.totalorder %s89, %s91
    %p98 = scmp.eq.s32.totalorder %s18, 1
    %p99 = por %p97, %p98
    %p100 = scmp.ne.s32.totalorder %s91, %s92
    %p101 = scmp.eq.s32.totalorder %s18, 0
    %p102 = por %p100, %p101
    %p103 = scmp.ne.s32.totalorder %s91, %s92
    %p104 = scmp.eq.s32.totalorder %s19, 1
    %p105 = por %p103, %p104
    %p107 = scmp.ne.s32.totalorder %s92, %s106
    %p108 = scmp.eq.s32.totalorder %s19, 0
    %p109 = por %p107, %p108
    %s111 = sadd.s32 %s110, 1
    %p114 = scmp.eq.s32.totalorder %s13, 1
    %p115 = scmp.ne.s32.totalorder %s110, %s112
    %p116 = scmp.eq.s32.totalorder %s13, 0
    %p117 = por %p115, %p116
    %p118 = scmp.ne.s32.totalorder %s110, %s112
    %p119 = scmp.eq.s32.totalorder %s18, 1
    %p120 = por %p118, %p119
    %p121 = scmp.ne.s32.totalorder %s112, %s113
    %p122 = scmp.eq.s32.totalorder %s18, 0
    %p123 = por %p121, %p122
    %p124 = scmp.ne.s32.totalorder %s112, %s113
    %p125 = scmp.eq.s32.totalorder %s19, 1
    %p126 = por %p124, %p125
    %p128 = scmp.ne.s32.totalorder %s113, %s127
    %p129 = scmp.eq.s32.totalorder %s19, 0
    %p130 = por %p128, %p129
    %s132 = sadd.s32 %s131, 1
    %p135 = scmp.eq.s32.totalorder %s13, 1
    %p136 = scmp.ne.s32.totalorder %s131, %s133
    %p137 = scmp.eq.s32.totalorder %s13, 0
    %p138 = por %p136, %p137
    %p139 = scmp.ne.s32.totalorder %s131, %s133
    %p140 = scmp.eq.s32.totalorder %s18, 1
    %p141 = por %p139, %p140
    %p142 = scmp.ne.s32.totalorder %s133, %s134
    %p143 = scmp.eq.s32.totalorder %s18, 0
    %p144 = por %p142, %p143
    %p145 = scmp.ne.s32.totalorder %s133, %s134
    %p146 = scmp.eq.s32.totalorder %s19, 1
    %p147 = por %p145, %p146
    %p149 = scmp.ne.s32.totalorder %s134, %s148
    %p150 = scmp.eq.s32.totalorder %s19, 0
    %p151 = por %p149, %p150
    %s153 = sadd.s32 %s152, 1
    %p156 = scmp.eq.s32.totalorder %s13, 1
    %p157 = scmp.ne.s32.totalorder %s152, %s154
    %p158 = scmp.eq.s32.totalorder %s13, 0
    %p159 = por %p157, %p158
    %p160 = scmp.ne.s32.totalorder %s152, %s154
    %p161 = scmp.eq.s32.totalorder %s18, 1
    %p162 = por %p160, %p161
    %p163 = scmp.ne.s32.totalorder %s154, %s155
    %p164 = scmp.eq.s32.totalorder %s18, 0
    %p165 = por %p163, %p164
    %p166 = scmp.ne.s32.totalorder %s154, %s155
    %p167 = scmp.eq.s32.totalorder %s19, 1
    %p168 = por %p166, %p167
    %p170 = scmp.ne.s32.totalorder %s155, %s169
    %p171 = scmp.eq.s32.totalorder %s19, 0
    %p172 = por %p170, %p171
    %s174 = sadd.s32 %s173, 1
    %p177 = scmp.eq.s32.totalorder %s13, 1
    %p178 = scmp.ne.s32.totalorder %s173, %s175
    %p179 = scmp.eq.s32.totalorder %s13, 0
    %p180 = por %p178, %p179
    %p181 = scmp.ne.s32.totalorder %s173, %s175
    %p182 = scmp.eq.s32.totalorder %s18, 1
    %p183 = por %p181, %p182
    %p184 = scmp.ne.s32.totalorder %s175, %s176
    %p185 = scmp.eq.s32.totalorder %s18, 0
    %p186 = por %p184, %p185
    %p187 = scmp.ne.s32.totalorder %s175, %s176
    %p188 = scmp.eq.s32.totalorder %s19, 1
    %p189 = por %p187, %p188
    %p191 = scmp.ne.s32.totalorder %s176, %s190
    %p192 = scmp.eq.s32.totalorder %s19, 0
    %p193 = por %p191, %p192
    %s194 = ssub.s32 %s20, %s32
    %s195 = ssub.s32 %s21, %s28
    %s196 = sor.u32 %s194, %s195
    %p197 = scmp.eq.s32.totalorder %s196, 0
    %s199 = sadd.s32 %s198, 1
    %s200 = scalar_select %p197, %s198, %s199
    %p203 = pneg %p197
    %p204 = scmp.eq.s32.totalorder %s13, 1
    %p205 = por %p203, %p204
    %p206 = scmp.ne.s32.totalorder %s198, %s201
    %p207 = scmp.eq.s32.totalorder %s13, 0
    %p208 = por %p206, %p207
    %p209 = scmp.ne.s32.totalorder %s198, %s201
    %p210 = scmp.eq.s32.totalorder %s18, 1
    %p211 = por %p209, %p210
    %p212 = scmp.ne.s32.totalorder %s201, %s202
    %p213 = scmp.eq.s32.totalorder %s18, 0
    %p214 = por %p212, %p213
    %p215 = scmp.ne.s32.totalorder %s201, %s202
    %p216 = scmp.eq.s32.totalorder %s19, 1
    %p217 = por %p215, %p216
    %p219 = scmp.ne.s32.totalorder %s202, %s218
    %p220 = scmp.eq.s32.totalorder %s19, 0
    %p221 = por %p219, %p220
    %p222 = scmp.le.s32.totalorder 1, %s13
    %p223 = scmp.lt.s32.totalorder %s13, 3
    %p224 = pnand %p222, %p223
    %p225 = pneg %p224
    // Predicated region
    $region9: #{conv_layer_forward.1} parent=5 // pred_check
      _
    $region10: #{conv_layer_forward.1} parent=5 // pred_check_branch
      %227 = sbr.rel (%p224) target = $region12
    $region11: #{conv_layer_forward.1} parent=5 // pred_region
      %s228 = ssub.s32 %s13, 1
      // Predicated region
      $region13: #{conv_layer_forward.1} parent=11 // pred_check
        %p229 = pneg %p102
      $region14: #{conv_layer_forward.1} parent=11 // pred_check_branch
        %231 = sbr.rel (%p229) target = $region16
      $region15: #{conv_layer_forward.1} parent=11 // pred_region
        _
      $region16: #{conv_layer_forward.1} parent=11 // pred_fallthru
        _
      // Predicated region
      $region17: #{conv_layer_forward.1} parent=11 // pred_check
        %p232 = pneg %p123
      $region18: #{conv_layer_forward.1} parent=11 // pred_check_branch
        %234 = sbr.rel (%p232) target = $region20
      $region19: #{conv_layer_forward.1} parent=11 // pred_region
        _
      $region20: #{conv_layer_forward.1} parent=11 // pred_fallthru
        _
      // Predicated region
      $region21: #{conv_layer_forward.1} parent=11 // pred_check
        %p235 = pneg %p144
      $region22: #{conv_layer_forward.1} parent=11 // pred_check_branch
        %237 = sbr.rel (%p235) target = $region24
      $region23: #{conv_layer_forward.1} parent=11 // pred_region
        _
      $region24: #{conv_layer_forward.1} parent=11 // pred_fallthru
        _
      // Predicated region
      $region25: #{conv_layer_forward.1} parent=11 // pred_check
        %p238 = pneg %p165
      $region26: #{conv_layer_forward.1} parent=11 // pred_check_branch
        %240 = sbr.rel (%p238) target = $region28
      $region27: #{conv_layer_forward.1} parent=11 // pred_region
        _
      $region28: #{conv_layer_forward.1} parent=11 // pred_fallthru
        _
      // Predicated region
      $region29: #{conv_layer_forward.1} parent=11 // pred_check
        %p241 = pneg %p186
      $region30: #{conv_layer_forward.1} parent=11 // pred_check_branch
        %243 = sbr.rel (%p241) target = $region32
      $region31: #{conv_layer_forward.1} parent=11 // pred_region
        _
      $region32: #{conv_layer_forward.1} parent=11 // pred_fallthru
        _
    $region12: #{conv_layer_forward.1} parent=5 // pred_fallthru
      _
    %p244 = scmp.lt.s32.totalorder %s13, 2
    // Predicated region
    $region33: #{conv_layer_forward.1} parent=5 // pred_check
      %p245 = pneg %p244
    $region34: #{conv_layer_forward.1} parent=5 // pred_check_branch
      %247 = sbr.rel (%p245) target = $region36
    $region35: #{conv_layer_forward.1} parent=5 // pred_region
      // Predicated region
      $region37: #{conv_layer_forward.1} parent=35 // pred_check
        %p248 = pneg %p47
      $region38: #{conv_layer_forward.1} parent=35 // pred_check_branch
        %250 = sbr.rel (%p248) target = $region40
      $region39: #{conv_layer_forward.1} parent=35 // pred_region
        %p251 = scmp.lt.s32.totalorder %s20, 1
        %s252 = scalar_select %p251, %s20, 1
        %p253 = scmp.lt.s32.totalorder %s21, 0
        %s254 = scalar_select %p253, %s21, 0
        %s255 = sadd.s32 %s254, %s252
        %s256 = smul.addr %s255, 4
        %s257 = scalar_lea.vmem %s0, %s256
      $region40: #{conv_layer_forward.1} parent=35 // pred_fallthru
        _
      // Predicated region
      $region41: #{conv_layer_forward.1} parent=35 // pred_check
        %p258 = pneg %p75
      $region42: #{conv_layer_forward.1} parent=35 // pred_check_branch
        %260 = sbr.rel (%p258) target = $region44
      $region43: #{conv_layer_forward.1} parent=35 // pred_region
        %p261 = scmp.lt.s32.totalorder %s20, 1
        %s262 = scalar_select %p261, %s20, 1
        %p263 = scmp.lt.s32.totalorder %s21, 0
        %s264 = scalar_select %p263, %s21, 0
        %s265 = sadd.s32 %s264, %s262
        %s266 = smul.addr %s265, 4
        %s267 = scalar_lea.vmem %s1, %s266
      $region44: #{conv_layer_forward.1} parent=35 // pred_fallthru
        _
    $region36: #{conv_layer_forward.1} parent=5 // pred_fallthru
      _
    %p268 = scmp.le.s32.totalorder 1, %s13
    %p269 = scmp.lt.s32.totalorder %s13, 3
    %p270 = pnand %p268, %p269
    %p271 = pneg %p270
    // Predicated region
    $region45: #{conv_layer_forward.1} parent=5 // pred_check
      _
    $region46: #{conv_layer_forward.1} parent=5 // pred_check_branch
      %273 = sbr.rel (%p270) target = $region48
    $region47: #{conv_layer_forward.1} parent=5 // pred_region
      %s274 = ssub.s32 %s13, 1
      %p275 = scmp.lt.s32.totalorder %s22, 1
      %s276 = scalar_select %p275, %s22, 1
      %p277 = scmp.lt.s32.totalorder %s23, 0
      %s278 = scalar_select %p277, %s23, 0
      %s279 = sadd.s32 %s278, %s276
      %s280 = smul.addr %s279, 4
      %s281 = scalar_lea.vmem %s0, %s280
      %p282 = pneg %p53
      %p283 = pneg %p50
      %p284 = scmp.lt.s32.totalorder %s22, 1
      %s285 = scalar_select %p284, %s22, 1
      %p286 = scmp.lt.s32.totalorder %s23, 0
      %s287 = scalar_select %p286, %s23, 0
      %s288 = sadd.s32 %s287, %s285
      %s289 = smul.addr %s288, 4
      %s290 = scalar_lea.vmem %s1, %s289
      %p291 = pneg %p81
      %p292 = pneg %p78
      %p293 = pneg %p102
      %p294 = pneg %p99
      %p295 = pneg %p123
      %p296 = pneg %p120
      %p297 = pneg %p144
      %p298 = pneg %p141
      %p299 = pneg %p165
      %p300 = pneg %p162
      %p301 = pneg %p186
      %p302 = pneg %p183
      %p303 = pneg %p214
      %p304 = pneg %p211
      %p305 = scmp.lt.s32.totalorder %s22, 1
      %s306 = scalar_select %p305, %s22, 1
      %p307 = scmp.lt.s32.totalorder %s23, 0
      %s308 = scalar_select %p307, %s23, 0
      %s309 = smul.addr %s306, 4
      %s310 = sadd.s32 %s308, %s309
      %s311 = smul.addr %s310, 8
      %s312 = scalar_lea.vmem %s7, %s311
      %p313 = scmp.lt.s32.totalorder %s22, 1
      %s314 = scalar_select %p313, %s22, 1
      %p315 = scmp.lt.s32.totalorder %s23, 0
      %s316 = scalar_select %p315, %s23, 0
      %s317 = sadd.s32 %s316, %s314
      %s318 = smul.addr %s317, 4
      %s319 = scalar_lea.vmem %s0, %s318
      %p320 = scmp.lt.s32.totalorder %s22, 1
      %s321 = scalar_select %p320, %s22, 1
      %p322 = scmp.lt.s32.totalorder %s23, 0
      %s323 = scalar_select %p322, %s23, 0
      %s324 = sadd.s32 %s323, %s321
      %s325 = smul.addr %s324, 4
      %s326 = scalar_lea.vmem %s1, %s325
      %p327 = scmp.lt.s32.totalorder %s22, 1
      %s328 = scalar_select %p327, %s22, 1
      %p329 = scmp.lt.s32.totalorder %s23, 0
      %s330 = scalar_select %p329, %s23, 0
      %s331 = smul.addr %s328, 4
      %s332 = sadd.s32 %s330, %s331
      %s333 = smul.addr %s332, 8
      %s334 = scalar_lea.vmem %s7, %s333
      %v335 = vld [vmem:[%s2] sm:$0xff]
      %v336 = vld [vmem:[%s2 + $0x8] sm:$0xff]
      %v337 = vld [vmem:[%s2 + $0x10] sm:$0xff]
      %v338 = vld [vmem:[%s2 + $0x18] sm:$0xff]
      %v339 = vld [vmem:[%s319] sm:$0xf]
      %v340 = vld [vmem:[%s3] sm:$0xff]
      %v341 = vld [vmem:[%s3 + $0x8] sm:$0xff]
      %v342 = vld [vmem:[%s3 + $0x10] sm:$0xff]
      %v343 = vld [vmem:[%s3 + $0x18] sm:$0xff]
      %v344 = vld [vmem:[%s326] sm:$0xf]
      %vm345 = vcmask 31744
      %v347 = vsel %vm345, %v340, 0
      %v350 = vsel %vm345, %v341, 0
      %v353 = vsel %vm345, %v342, 0
      %v356 = vsel %vm345, %v343, 0
      %vm358 = vcmask 1043456
      %v360 = vsel %vm358, %v344, 0
      %362 = vmatprep.subr.mxu0 0.0
      %363 = vmatpush1.msra.mxu0 %v360
      %364 = vmatprep.subr.mxu0 0.0
      %365 = vmatpush1.msra.mxu0 0.0
      %366 = vmatprep.subr.mxu0 0.0
      %367 = vmatpush1.msra.mxu0 0.0
      %368 = vmatprep.subr.mxu0 0.0
      %369 = vmatpush1.msra.mxu0 0.0
      %370 = vmatprep.subr.mxu0 0.0
      %371 = vmatpush1.msra.mxu0 0.0
      %372 = vmatprep.subr.mxu0 0.0
      %373 = vmatpush1.msra.mxu0 0.0
      %374 = vmatprep.subr.mxu0 0.0
      %375 = vmatpush1.msra.mxu0 0.0
      %376 = vmatprep.subr.mxu0 0.0
      %377 = vmatpush1.msra.mxu0 0.0
      %378 = vmatprep.subr.mxu0 0.0
      %379 = vmatpush1.msra.mxu0 0.0
      %380 = vmatprep.subr.mxu0 0.0
      %381 = vmatpush1.msra.mxu0 0.0
      %382 = vmatprep.subr.mxu0 0.0
      %383 = vmatpush1.msra.mxu0 0.0
      %384 = vmatprep.subr.mxu0 0.0
      %385 = vmatpush1.msra.mxu0 0.0
      %386 = vmatprep.subr.mxu0 0.0
      %387 = vmatpush1.msra.mxu0 0.0
      %388 = vmatprep.subr.mxu0 0.0
      %389 = vmatpush1.msra.mxu0 0.0
      %390 = vmatprep.subr.mxu0 0.0
      %391 = vmatpush1.msra.mxu0 0.0
      %392 = vmatprep.subr.mxu0 0.0
      %393 = vmatpush1.msra.mxu0 0.0
      %394 = vmatprep.subr.mxu0 0.0
      %395 = vmatpush1.msra.mxu0 0.0
      %396 = vmatprep.subr.mxu0 0.0
      %397 = vmatpush1.msra.mxu0 0.0
      %398 = vmatprep.subr.mxu0 0.0
      %399 = vmatpush1.msra.mxu0 0.0
      %400 = vmatprep.subr.mxu0 0.0
      %401 = vmatpush1.msra.mxu0 0.0
      %402 = vmatprep.subr.mxu0 0.0
      %403 = vmatpush1.msra.mxu0 0.0
      %404 = vmatprep.subr.mxu0 0.0
      %405 = vmatpush1.msra.mxu0 0.0
      %406 = vmatprep.subr.mxu0 0.0
      %407 = vmatpush1.msra.mxu0 0.0
      %408 = vmatprep.subr.mxu0 0.0
      %409 = vmatpush1.msra.mxu0 0.0
      %410 = vmatprep.subr.mxu0 0.0
      %411 = vmatpush1.msra.mxu0 0.0
      %412 = vmatprep.subr.mxu0 0.0
      %413 = vmatpush1.msra.mxu0 0.0
      %414 = vmatprep.subr.mxu0 0.0
      %415 = vmatpush1.msra.mxu0 0.0
      %416 = vmatprep.subr.mxu0 0.0
      %417 = vmatpush1.msra.mxu0 0.0
      %418 = vmatprep.subr.mxu0 0.0
      %419 = vmatpush1.msra.mxu0 0.0
      %420 = vmatprep.subr.mxu0 0.0
      %421 = vmatpush1.msra.mxu0 0.0
      %422 = vmatprep.subr.mxu0 0.0
      %423 = vmatpush1.msra.mxu0 0.0
      %424 = vmatprep.subr.mxu0 0.0
      %425 = vmatpush1.msra.mxu0 0.0
      %426 = vmatprep.mubr.f32.mxu0 0.0
      %427 = vmatmul.mubr.f32.gmra.mrb[0].mxu0 %v347
      %v428 = vpop.f32.mrb[0].mxu0
      %v429 = vadd.f32 0.0, %v428
      %v430 = vpop.f32.mrb[0].mxu0
      %431 = vmatprep.mubr.f32.mxu0 0.0
      %432 = vmatmul.mubr.f32.gmra.mrb[0].mxu0 %v350
      %v433 = vpop.f32.mrb[0].mxu0
      %v434 = vadd.f32 0.0, %v433
      %v435 = vpop.f32.mrb[0].mxu0
      %436 = vmatprep.mubr.f32.mxu0 0.0
      %437 = vmatmul.mubr.f32.gmra.mrb[0].mxu0 %v353
      %v438 = vpop.f32.mrb[0].mxu0
      %v439 = vadd.f32 0.0, %v438
      %v440 = vpop.f32.mrb[0].mxu0
      %441 = vmatprep.mubr.f32.mxu0 0.0
      %442 = vmatmul.mubr.f32.gmra.mrb[0].mxu0 %v356
      %v443 = vpop.f32.mrb[0].mxu0
      %v444 = vadd.f32 0.0, %v443
      %v445 = vpop.f32.mrb[0].mxu0
      %446 = vdwg.mxu0
      %v448 = vsel %vm345, %v335, 0
      %v451 = vsel %vm345, %v336, 0
      %v454 = vsel %vm345, %v337, 0
      %v457 = vsel %vm345, %v338, 0
      %v460 = vsel %vm358, %v339, 0
      %462 = vmatprep.subr.mxu0 0.0
      %463 = vmatpush1.msra.mxu0 %v460
      %464 = vmatprep.subr.mxu0 0.0
      %465 = vmatpush1.msra.mxu0 0.0
      %466 = vmatprep.subr.mxu0 0.0
      %467 = vmatpush1.msra.mxu0 0.0
      %468 = vmatprep.subr.mxu0 0.0
      %469 = vmatpush1.msra.mxu0 0.0
      %470 = vmatprep.subr.mxu0 0.0
      %471 = vmatpush1.msra.mxu0 0.0
      %472 = vmatprep.subr.mxu0 0.0
      %473 = vmatpush1.msra.mxu0 0.0
      %474 = vmatprep.subr.mxu0 0.0
      %475 = vmatpush1.msra.mxu0 0.0
      %476 = vmatprep.subr.mxu0 0.0
      %477 = vmatpush1.msra.mxu0 0.0
      %478 = vmatprep.subr.mxu0 0.0
      %479 = vmatpush1.msra.mxu0 0.0
      %480 = vmatprep.subr.mxu0 0.0
      %481 = vmatpush1.msra.mxu0 0.0
      %482 = vmatprep.subr.mxu0 0.0
      %483 = vmatpush1.msra.mxu0 0.0
      %484 = vmatprep.subr.mxu0 0.0
      %485 = vmatpush1.msra.mxu0 0.0
      %486 = vmatprep.subr.mxu0 0.0
      %487 = vmatpush1.msra.mxu0 0.0
      %488 = vmatprep.subr.mxu0 0.0
      %489 = vmatpush1.msra.mxu0 0.0
      %490 = vmatprep.subr.mxu0 0.0
      %491 = vmatpush1.msra.mxu0 0.0
      %492 = vmatprep.subr.mxu0 0.0
      %493 = vmatpush1.msra.mxu0 0.0
      %494 = vmatprep.subr.mxu0 0.0
      %495 = vmatpush1.msra.mxu0 0.0
      %496 = vmatprep.subr.mxu0 0.0
      %497 = vmatpush1.msra.mxu0 0.0
      %498 = vmatprep.subr.mxu0 0.0
      %499 = vmatpush1.msra.mxu0 0.0
      %500 = vmatprep.subr.mxu0 0.0
      %501 = vmatpush1.msra.mxu0 0.0
      %502 = vmatprep.subr.mxu0 0.0
      %503 = vmatpush1.msra.mxu0 0.0
      %504 = vmatprep.subr.mxu0 0.0
      %505 = vmatpush1.msra.mxu0 0.0
      %506 = vmatprep.subr.mxu0 0.0
      %507 = vmatpush1.msra.mxu0 0.0
      %508 = vmatprep.subr.mxu0 0.0
      %509 = vmatpush1.msra.mxu0 0.0
      %510 = vmatprep.subr.mxu0 0.0
      %511 = vmatpush1.msra.mxu0 0.0
      %512 = vmatprep.subr.mxu0 0.0
      %513 = vmatpush1.msra.mxu0 0.0
      %514 = vmatprep.subr.mxu0 0.0
      %515 = vmatpush1.msra.mxu0 0.0
      %516 = vmatprep.subr.mxu0 0.0
      %517 = vmatpush1.msra.mxu0 0.0
      %518 = vmatprep.subr.mxu0 0.0
      %519 = vmatpush1.msra.mxu0 0.0
      %520 = vmatprep.subr.mxu0 0.0
      %521 = vmatpush1.msra.mxu0 0.0
      %522 = vmatprep.subr.mxu0 0.0
      %523 = vmatpush1.msra.mxu0 0.0
      %524 = vmatprep.subr.mxu0 0.0
      %525 = vmatpush1.msra.mxu0 0.0
      %526 = vmatprep.mubr.f32.mxu0 0.0
      %527 = vmatmul.mubr.f32.gmra.mrb[0].mxu0 %v448
      %v528 = vpop.f32.mrb[0].mxu0
      %v529 = vadd.f32 %v429, %v528
      %v530 = vpop.f32.mrb[0].mxu0
      %531 = vmatprep.mubr.f32.mxu0 0.0
      %532 = vmatmul.mubr.f32.gmra.mrb[0].mxu0 %v451
      %v533 = vpop.f32.mrb[0].mxu0
      %v534 = vadd.f32 %v434, %v533
      %v535 = vpop.f32.mrb[0].mxu0
      %536 = vmatprep.mubr.f32.mxu0 0.0
      %537 = vmatmul.mubr.f32.gmra.mrb[0].mxu0 %v454
      %v538 = vpop.f32.mrb[0].mxu0
      %v539 = vadd.f32 %v439, %v538
      %v540 = vpop.f32.mrb[0].mxu0
      %541 = vmatprep.mubr.f32.mxu0 0.0
      %542 = vmatmul.mubr.f32.gmra.mrb[0].mxu0 %v457
      %v543 = vpop.f32.mrb[0].mxu0
      %v544 = vadd.f32 %v444, %v543
      %v545 = vpop.f32.mrb[0].mxu0
      %546 = vdwg.mxu0
      %v547 = vld [vmem:[%s4] sm:$0xff]
      %v548 = vld [vmem:[%s4 + $0x8] sm:$0xff]
      %v549 = vld [vmem:[%s4 + $0x10] sm:$0xff]
      %v550 = vld [vmem:[%s4 + $0x18] sm:$0xff]
      %552 = vset.pattern.permute.xlu0 0
      %553 = vperm.xlu0 %552, %v547
      %v554 = vpop.permute.xlu0 %553
      %557 = vset.pattern.permute.xlu0 0
      %558 = vperm.xlu0 %557, %v548
      %v559 = vpop.permute.xlu0 %558
      %562 = vset.pattern.permute.xlu0 0
      %563 = vperm.xlu0 %562, %v549
      %v564 = vpop.permute.xlu0 %563
      %567 = vset.pattern.permute.xlu0 0
      %568 = vperm.xlu0 %567, %v550
      %v569 = vpop.permute.xlu0 %568
      %v571 = vadd.f32 %v529, %v554
      %v572 = vadd.f32 %v534, %v559
      %v573 = vadd.f32 %v539, %v564
      %v574 = vadd.f32 %v544, %v569
      %v575 = vtanh.pop %v571
      %v576 = vtanh.pop %v572
      %v577 = vtanh.pop %v573
      %v578 = vtanh.pop %v574
      %v579 = vld [vmem:[%s5] sm:$0xff]
      %v580 = vld [vmem:[%s5 + $0x8] sm:$0xff]
      %v581 = vld [vmem:[%s5 + $0x10] sm:$0xff]
      %v582 = vld [vmem:[%s5 + $0x18] sm:$0xff]
      %584 = vset.pattern.permute.xlu0 0
      %585 = vperm.xlu0 %584, %v579
      %v586 = vpop.permute.xlu0 %585
      %589 = vset.pattern.permute.xlu0 0
      %590 = vperm.xlu0 %589, %v580
      %v591 = vpop.permute.xlu0 %590
      %594 = vset.pattern.permute.xlu0 0
      %595 = vperm.xlu0 %594, %v581
      %v596 = vpop.permute.xlu0 %595
      %599 = vset.pattern.permute.xlu0 0
      %600 = vperm.xlu0 %599, %v582
      %v601 = vpop.permute.xlu0 %600
      %v603 = vmul.f32 %v586, %v575
      %v604 = vmul.f32 %v591, %v576
      %v605 = vmul.f32 %v596, %v577
      %v606 = vmul.f32 %v601, %v578
      %v607 = vld [vmem:[%s6] sm:$0xff]
      %v608 = vld [vmem:[%s6 + $0x8] sm:$0xff]
      %v609 = vld [vmem:[%s6 + $0x10] sm:$0xff]
      %v610 = vld [vmem:[%s6 + $0x18] sm:$0xff]
      %612 = vset.pattern.permute.xlu0 0
      %613 = vperm.xlu0 %612, %v607
      %v614 = vpop.permute.xlu0 %613
      %617 = vset.pattern.permute.xlu0 0
      %618 = vperm.xlu0 %617, %v608
      %v619 = vpop.permute.xlu0 %618
      %622 = vset.pattern.permute.xlu0 0
      %623 = vperm.xlu0 %622, %v609
      %v624 = vpop.permute.xlu0 %623
      %627 = vset.pattern.permute.xlu0 0
      %628 = vperm.xlu0 %627, %v610
      %v629 = vpop.permute.xlu0 %628
      %v631 = vadd.f32 %v603, %v614
      %v632 = vadd.f32 %v604, %v619
      %v633 = vadd.f32 %v605, %v624
      %v634 = vadd.f32 %v606, %v629
      %vm635 = vcmask 130048
      %636 = vst.msk [vmem:[%s334] sm:$0xff] %vm635, %v631
      %637 = vst.msk [vmem:[%s334 + $0x8] sm:$0xff] %vm635, %v632
      %638 = vst.msk [vmem:[%s334 + $0x10] sm:$0xff] %vm635, %v633
      %639 = vst.msk [vmem:[%s334 + $0x18] sm:$0xff] %vm635, %v634
      %p640 = scmp.lt.s32.totalorder %s22, 1
      %s641 = scalar_select %p640, %s22, 1
      %p642 = scmp.lt.s32.totalorder %s23, 0
      %s643 = scalar_select %p642, %s23, 0
      %s644 = smul.addr %s641, 4
      %s645 = sadd.s32 %s643, %s644
      %s646 = smul.addr %s645, 8
      %s647 = scalar_lea.vmem %s7, %s646
      // Predicated region
      $region49: #{conv_layer_forward.1} parent=47 // pred_check
        %p648 = pneg %p211
      $region50: #{conv_layer_forward.1} parent=47 // pred_check_branch
        %650 = sbr.rel (%p648) target = $region52
      $region51: #{conv_layer_forward.1} parent=47 // pred_region
        _
      $region52: #{conv_layer_forward.1} parent=47 // pred_fallthru
        _
    $region48: #{conv_layer_forward.1} parent=5 // pred_fallthru
      _
    %p651 = scmp.le.s32.totalorder 2, %s13
    // Predicated region
    $region53: #{conv_layer_forward.1} parent=5 // pred_check
      %p652 = pneg %p651
    $region54: #{conv_layer_forward.1} parent=5 // pred_check_branch
      %654 = sbr.rel (%p652) target = $region56
    $region55: #{conv_layer_forward.1} parent=5 // pred_region
      %s655 = ssub.s32 %s13, 2
      // Predicated region
      $region57: #{conv_layer_forward.1} parent=55 // pred_check
        %p656 = pneg %p217
      $region58: #{conv_layer_forward.1} parent=55 // pred_check_branch
        %658 = sbr.rel (%p656) target = $region60
      $region59: #{conv_layer_forward.1} parent=55 // pred_region
        %p659 = scmp.lt.s32.totalorder %s24, 1
        %s660 = scalar_select %p659, %s24, 1
        %p661 = scmp.lt.s32.totalorder %s25, 0
        %s662 = scalar_select %p661, %s25, 0
        %s663 = smul.addr %s660, 4
        %s664 = sadd.s32 %s662, %s663
        %s665 = smul.addr %s664, 8
        %s666 = scalar_lea.vmem %s7, %s665
      $region60: #{conv_layer_forward.1} parent=55 // pred_fallthru
        _
    $region56: #{conv_layer_forward.1} parent=5 // pred_fallthru
      _
  $region6: #{conv_layer_forward.1} parent=0 // loop_footer
    %s17 = sadd.s32 1, %s13
  $region7: #{conv_layer_forward.1} parent=0 // loop_footer_branch
    %12 = sbr.rel target = $region3
  $region8: #{conv_layer_forward.1} parent=0 // loop_exit
    _

</llo_original>
